<compile_context>
chip_gen: v5e
topology: v5e:2x2
jax: 0.10.0
libtpu: 0.0.40
codegen_flags: <defaults>
</compile_context>

<pallas_src>
import math

import jax
import jax.numpy as jnp
from jax.experimental import pallas as pl
from jax.experimental.pallas import tpu as pltpu

D_MODEL = 32
N_HEADS = 4
D_HEAD = D_MODEL // N_HEADS
D_FF = 64
N_LAYERS = 2
EPS = 1e-6        # tutorial LayerNormalization eps (added to std, not variance)
NEG_INF = -1e9

# Set to jnp.bfloat16 on v6e / v7x for native-MXU matmul inputs (keep f32 accumulate
# via preferred_element_type).  f32 default preserves the PyTorch f32 semantics.
MATMUL_DTYPE = jnp.float32


def _layer_norm(x, alpha, bias):
    # Matches the tutorial LayerNormalization: mean over last dim, torch.std
    # (unbiased, ddof=1), scalar alpha/bias, eps added to std.
    mean = jnp.mean(x, axis=-1, keepdims=True)
    var = jnp.sum((x - mean) ** 2, axis=-1, keepdims=True) / (x.shape[-1] - 1)
    std = jnp.sqrt(var)
    return alpha * (x - mean) / (std + EPS) + bias


def encoder_kernel(ln_ref, lnf_ref, x_ref, mask_ref,
                   wq_ref, wk_ref, wv_ref, wo_ref,
                   w1_ref, b1_ref, w2_ref, b2_ref,
                   o_ref, x_scr):
    l = pl.program_id(1)
    last = pl.num_programs(1) - 1
    b_blk, S, D = o_ref.shape
    M = b_blk * S

    # Load the activation block once (layer 0) into the VMEM carry.
    @pl.when(l == 0)
    def _():
        x_scr[...] = x_ref[...].reshape(M, D).astype(jnp.float32)

    x = x_scr[...]                              # (M, D) f32, batch-flattened rows

    # Per-layer LN scalars from SMEM (dynamic layer index).
    a1 = ln_ref[l, 0]
    c1 = ln_ref[l, 1]
    a2 = ln_ref[l, 2]
    c2 = ln_ref[l, 3]

    # Per-layer weight blocks (leading layer dim of size 1).
    wq = wq_ref[0]                              # (H, D, DH)
    wk = wk_ref[0]
    wv = wv_ref[0]
    wo = wo_ref[0]                              # (H, DH, D)
    w1 = w1_ref[0]                              # (D, FF)
    b1 = b1_ref[0]                              # (1, FF)
    w2 = w2_ref[0]                              # (FF, D)
    b2 = b2_ref[0]                              # (1, D)

    # ---- self-attention sub-layer (pre-norm residual) ----
    xn = _layer_norm(x, a1, c1)
    xn_m = xn.astype(MATMUL_DTYPE)
    scale = 1.0 / math.sqrt(D_HEAD)

    # Per-head projections over the batch-flattened (M, D) slab: weights are
    # pre-split per head, so no activation lane slicing / concat is needed.
    qs = [jnp.dot(xn_m, wq[h], preferred_element_type=jnp.float32)
          for h in range(N_HEADS)]
    ks = [jnp.dot(xn_m, wk[h], preferred_element_type=jnp.float32)
          for h in range(N_HEADS)]
    vs = [jnp.dot(xn_m, wv[h], preferred_element_type=jnp.float32)
          for h in range(N_HEADS)]

    attn_rows = []
    for bb in range(b_blk):                     # static loop, sublane-aligned slices
        rs = slice(bb * S, (bb + 1) * S)
        masked = mask_ref[bb] == 0.0            # (1, S); hoisted out of the head loop
        acc = None
        for h in range(N_HEADS):
            s = jnp.dot(qs[h][rs], ks[h][rs].T,
                        preferred_element_type=jnp.float32) * scale      # (S, S)
            s = jnp.where(masked, NEG_INF, s)   # exact masked_fill semantics
            s = s - jnp.max(s, axis=-1, keepdims=True)
            e = jnp.exp(s)
            p = e / jnp.sum(e, axis=-1, keepdims=True)
            pv = jnp.dot(p.astype(MATMUL_DTYPE), vs[h][rs].astype(MATMUL_DTYPE),
                         preferred_element_type=jnp.float32)              # (S, DH)
            c = jnp.dot(pv.astype(MATMUL_DTYPE), wo[h],
                        preferred_element_type=jnp.float32)               # (S, D)
            acc = c if acc is None else acc + c   # == concat(heads) @ W_o, no concat
        attn_rows.append(acc)
    attn = attn_rows[0] if b_blk == 1 else jnp.concatenate(attn_rows, axis=0)
    x = x + attn                                 # dropout = identity (eval mode)

    # ---- feed-forward sub-layer (pre-norm residual) ----
    xn2 = _layer_norm(x, a2, c2)
    h1 = jnp.maximum(
        jnp.dot(xn2.astype(MATMUL_DTYPE), w1,
                preferred_element_type=jnp.float32) + b1, 0.0)
    ff = jnp.dot(h1.astype(MATMUL_DTYPE), w2,
                 preferred_element_type=jnp.float32) + b2
    x = x + ff

    x_scr[...] = x                               # carry to next layer

    # ---- final LayerNormalization, fused into the last layer step ----
    @pl.when(l == last)
    def _():
        y = _layer_norm(x, lnf_ref[0], lnf_ref[1])
        o_ref[...] = y.reshape(b_blk, S, D).astype(o_ref.dtype)


def _default_b_blk(batch):
    # v7x has 2 TensorCores/chip: keep a parallel batch axis of >= 2 so the second
    # core is used.  Single-TC chips (v5e/v6e): fold the whole batch into one grid
    # step (batch flattened into the matmul M dimension, no per-step overhead).
    try:
        kind = jax.devices()[0].device_kind.lower()
    except Exception:
        kind = ""
    multi_core = any(tag in kind for tag in ("v7", "7x", "v4", "v5p"))
    if multi_core and batch % 2 == 0:
        return batch // 2
    return batch


def encoder_forward(x, mask, params, *, b_blk=None):
    B, S, D = x.shape
    L = params["ln"].shape[0]
    if b_blk is None:
        b_blk = _default_b_blk(B)
    assert B % b_blk == 0
    nb = B // b_blk

    def batch_spec(shape):
        return pl.BlockSpec(shape, lambda b, l: (b, 0, 0))

    def layer_spec(full_shape):
        ndim = len(full_shape)
        blk = (1,) + tuple(full_shape[1:])
        return pl.BlockSpec(blk, lambda b, l, _n=ndim: (l,) + (0,) * (_n - 1))

    smem_spec = pl.BlockSpec(memory_space=pltpu.SMEM)

    return pl.pallas_call(
        encoder_kernel,
        out_shape=jax.ShapeDtypeStruct((B, S, D), x.dtype),
        grid=(nb, L),
        in_specs=[
            smem_spec,                               # per-layer LN scalars (L, 4)
            smem_spec,                               # final LN scalars (2,)
            batch_spec((b_blk, S, D)),               # x
            batch_spec((b_blk, 1, S)),               # mask
            layer_spec(params["wq"].shape),          # (L, H, D, DH)
            layer_spec(params["wk"].shape),
            layer_spec(params["wv"].shape),
            layer_spec(params["wo"].shape),          # (L, H, DH, D)
            layer_spec(params["w1"].shape),          # (L, D, FF)
            layer_spec(params["b1"].shape),          # (L, 1, FF)
            layer_spec(params["w2"].shape),          # (L, FF, D)
            layer_spec(params["b2"].shape),          # (L, 1, D)
        ],
        out_specs=batch_spec((b_blk, S, D)),
        scratch_shapes=[pltpu.VMEM((b_blk * S, D), jnp.float32)],
        compiler_params=pltpu.CompilerParams(
            dimension_semantics=("parallel", "arbitrary")),
    )(params["ln"], params["ln_final"], x, mask,
      params["wq"], params["wk"], params["wv"], params["wo"],
      params["w1"], params["b1"], params["w2"], params["b2"])


def init_params(key):
    L, D, H, DH, FF = N_LAYERS, D_MODEL, N_HEADS, D_HEAD, D_FF
    sa = 1.0 / math.sqrt(D)
    sf = 1.0 / math.sqrt(FF)
    ks = jax.random.split(key, 6)
    wq = jax.random.normal(ks[0], (L, D, D), jnp.float32) * sa
    wk = jax.random.normal(ks[1], (L, D, D), jnp.float32) * sa
    wv = jax.random.normal(ks[2], (L, D, D), jnp.float32) * sa
    wo = jax.random.normal(ks[3], (L, D, D), jnp.float32) * sa
    w1 = jax.random.normal(ks[4], (L, D, FF), jnp.float32) * sa
    w2 = jax.random.normal(ks[5], (L, FF, D), jnp.float32) * sf
    return dict(
        # Per-head column blocks of W_q/W_k/W_v and row blocks of W_o so the kernel
        # never slices activations along the lane axis.
        wq=wq.reshape(L, D, H, DH).transpose(0, 2, 1, 3).astype(MATMUL_DTYPE),
        wk=wk.reshape(L, D, H, DH).transpose(0, 2, 1, 3).astype(MATMUL_DTYPE),
        wv=wv.reshape(L, D, H, DH).transpose(0, 2, 1, 3).astype(MATMUL_DTYPE),
        wo=wo.reshape(L, H, DH, D).astype(MATMUL_DTYPE),
        w1=w1.astype(MATMUL_DTYPE),
        b1=jnp.zeros((L, 1, FF), jnp.float32),
        w2=w2.astype(MATMUL_DTYPE),
        b2=jnp.zeros((L, 1, D), jnp.float32),
        # [alpha1, bias1, alpha2, bias2] per layer — tutorial init: ones / zeros
        ln=jnp.tile(jnp.array([1.0, 0.0, 1.0, 0.0], jnp.float32), (L, 1)),
        ln_final=jnp.array([1.0, 0.0], jnp.float32),
    )


def encoder_reference(x, mask, params):
    # Pure-JAX reference matching the PyTorch tutorial Encoder (eval mode).
    L, D, H, DH = params["ln"].shape[0], D_MODEL, N_HEADS, D_HEAD
    B, S, _ = x.shape
    scale = 1.0 / math.sqrt(DH)
    for l in range(L):
        a1, c1, a2, c2 = [params["ln"][l, i] for i in range(4)]
        wq = params["wq"][l].astype(jnp.float32).transpose(1, 0, 2).reshape(D, D)
        wk = params["wk"][l].astype(jnp.float32).transpose(1, 0, 2).reshape(D, D)
        wv = params["wv"][l].astype(jnp.float32).transpose(1, 0, 2).reshape(D, D)
        wo = params["wo"][l].astype(jnp.float32).reshape(D, D)
        w1 = params["w1"][l].astype(jnp.float32)
        w2 = params["w2"][l].astype(jnp.float32)
        b1, b2 = params["b1"][l], params["b2"][l]

        xn = _layer_norm(x, a1, c1)
        q = (xn @ wq).reshape(B, S, H, DH).transpose(0, 2, 1, 3)
        k = (xn @ wk).reshape(B, S, H, DH).transpose(0, 2, 1, 3)
        v = (xn @ wv).reshape(B, S, H, DH).transpose(0, 2, 1, 3)
        s = jnp.einsum("bhsd,bhtd->bhst", q, k) * scale
        s = jnp.where(mask[:, None, :, :] == 0.0, NEG_INF, s)
        p = jax.nn.softmax(s, axis=-1)
        o = jnp.einsum("bhst,bhtd->bhsd", p, v).transpose(0, 2, 1, 3).reshape(B, S, D)
        x = x + o @ wo
        xn2 = _layer_norm(x, a2, c2)
        x = x + jnp.maximum(xn2 @ w1 + b1, 0.0) @ w2 + b2
    return _layer_norm(x, params["ln_final"][0], params["ln_final"][1])


if __name__ == "__main__":
    key = jax.random.PRNGKey(0)
    kx, kp = jax.random.split(key)

    B, S = 2, 8
    x = jax.random.normal(kx, (B, S, D_MODEL), dtype=jnp.float32)
    mask = jnp.ones((B, 1, S), dtype=jnp.float32)
    mask = mask.at[1, 0, 6:].set(0.0)          # pad-mask the last 2 keys of batch 1

    params = init_params(kp)

    out = jax.block_until_ready(encoder_forward(x, mask, params))
    assert out.shape == (B, S, D_MODEL)
    assert bool(jnp.all(jnp.isfinite(out)))

    if MATMUL_DTYPE == jnp.float32:            # (loosen tolerance if bf16 is enabled)
        ref = encoder_reference(x, mask, params)
        assert bool(jnp.allclose(out, ref, rtol=2e-4, atol=2e-4))

    print("KERNEL_OK")
</pallas_src>

<mosaic_0001>
module attributes {stable_mosaic.version = 11 : i64} {
  func.func @encoder_kernel(%arg0: i32, %arg1: i32, %arg2: memref<2x4xf32, #tpu.memory_space<smem>>, %arg3: memref<2xf32, #tpu.memory_space<smem>>, %arg4: memref<2x8x32xf32, #tpu.memory_space<vmem>>, %arg5: memref<2x1x8xf32, #tpu.memory_space<vmem>>, %arg6: memref<1x4x32x8xf32, #tpu.memory_space<vmem>>, %arg7: memref<1x4x32x8xf32, #tpu.memory_space<vmem>>, %arg8: memref<1x4x32x8xf32, #tpu.memory_space<vmem>>, %arg9: memref<1x4x8x32xf32, #tpu.memory_space<vmem>>, %arg10: memref<1x32x64xf32, #tpu.memory_space<vmem>>, %arg11: memref<1x1x64xf32, #tpu.memory_space<vmem>>, %arg12: memref<1x64x32xf32, #tpu.memory_space<vmem>>, %arg13: memref<1x1x32xf32, #tpu.memory_space<vmem>>, %arg14: memref<2x8x32xf32, #tpu.memory_space<vmem>>, %arg15: memref<16x32xf32, #tpu.memory_space<vmem>>) attributes {dimension_semantics = [#tpu.dimension_semantics<parallel>, #tpu.dimension_semantics<arbitrary>], iteration_bounds = array<i64: 1, 2>, scalar_prefetch = 0 : i64, scratch_operands = 1 : i64, tpu.core_type = #tpu.core_type<tc>, window_params = [{transform_indices = @transform_0, window_bounds = array<i64: 2, 4>}, {transform_indices = @transform_1, window_bounds = array<i64: 2>}, {transform_indices = @transform_2, window_bounds = array<i64: 2, 8, 32>}, {transform_indices = @transform_3, window_bounds = array<i64: 2, 1, 8>}, {transform_indices = @transform_4, window_bounds = array<i64: 1, 4, 32, 8>}, {transform_indices = @transform_5, window_bounds = array<i64: 1, 4, 32, 8>}, {transform_indices = @transform_6, window_bounds = array<i64: 1, 4, 32, 8>}, {transform_indices = @transform_7, window_bounds = array<i64: 1, 4, 8, 32>}, {transform_indices = @transform_8, window_bounds = array<i64: 1, 32, 64>}, {transform_indices = @transform_9, window_bounds = array<i64: 1, 1, 64>}, {transform_indices = @transform_10, window_bounds = array<i64: 1, 64, 32>}, {transform_indices = @transform_11, window_bounds = array<i64: 1, 1, 32>}, {transform_indices = @transform_12, window_bounds = array<i64: 2, 8, 32>}]} {
    %c0_i32 = arith.constant 0 : i32
    %0 = arith.cmpi eq, %arg1, %c0_i32 : i32
    %1 = arith.extui %0 : i1 to i32
    %c0_i32_0 = arith.constant 0 : i32
    %2 = arith.cmpi ne, %1, %c0_i32_0 : i32
    scf.if %2 {
      %c0_122 = arith.constant 0 : index
      %c0_123 = arith.constant 0 : index
      %c0_124 = arith.constant 0 : index
      %329 = vector.load %arg4[%c0_122, %c0_123, %c0_124] : memref<2x8x32xf32, #tpu.memory_space<vmem>>, vector<2x8x32xf32>
      %330 = vector.shape_cast %329 : vector<2x8x32xf32> to vector<16x32xf32>
      %c0_125 = arith.constant 0 : index
      %c0_126 = arith.constant 0 : index
      %331 = vector.load %arg15[%c0_125, %c0_126] : memref<16x32xf32, #tpu.memory_space<vmem>>, vector<16x32xf32>
      tpu.vector_store %arg15[%c0_125, %c0_126], %330 {strides = array<i32>} : memref<16x32xf32, #tpu.memory_space<vmem>>, vector<16x32xf32>,
    } else {
    }
    %c0 = arith.constant 0 : index
    %c0_1 = arith.constant 0 : index
    %3 = vector.load %arg15[%c0, %c0_1] : memref<16x32xf32, #tpu.memory_space<vmem>>, vector<16x32xf32>
    %4 = arith.index_cast %arg1 : i32 to index
    %c0_2 = arith.constant 0 : index
    %5 = memref.load %arg2[%4, %c0_2] : memref<2x4xf32, #tpu.memory_space<smem>>
    %6 = arith.index_cast %arg1 : i32 to index
    %c1 = arith.constant 1 : index
    %7 = memref.load %arg2[%6, %c1] : memref<2x4xf32, #tpu.memory_space<smem>>
    %8 = arith.index_cast %arg1 : i32 to index
    %c2 = arith.constant 2 : index
    %9 = memref.load %arg2[%8, %c2] : memref<2x4xf32, #tpu.memory_space<smem>>
    %10 = arith.index_cast %arg1 : i32 to index
    %c3 = arith.constant 3 : index
    %11 = memref.load %arg2[%10, %c3] : memref<2x4xf32, #tpu.memory_space<smem>>
    %c0_3 = arith.constant 0 : index
    %c0_4 = arith.constant 0 : index
    %c0_5 = arith.constant 0 : index
    %c0_6 = arith.constant 0 : index
    %12 = vector.load %arg6[%c0_3, %c0_4, %c0_5, %c0_6] : memref<1x4x32x8xf32, #tpu.memory_space<vmem>>, vector<1x4x32x8xf32>
    %13 = vector.shape_cast %12 : vector<1x4x32x8xf32> to vector<4x32x8xf32>
    %c0_7 = arith.constant 0 : index
    %c0_8 = arith.constant 0 : index
    %c0_9 = arith.constant 0 : index
    %c0_10 = arith.constant 0 : index
    %14 = vector.load %arg7[%c0_7, %c0_8, %c0_9, %c0_10] : memref<1x4x32x8xf32, #tpu.memory_space<vmem>>, vector<1x4x32x8xf32>
    %15 = vector.shape_cast %14 : vector<1x4x32x8xf32> to vector<4x32x8xf32>
    %c0_11 = arith.constant 0 : index
    %c0_12 = arith.constant 0 : index
    %c0_13 = arith.constant 0 : index
    %c0_14 = arith.constant 0 : index
    %16 = vector.load %arg8[%c0_11, %c0_12, %c0_13, %c0_14] : memref<1x4x32x8xf32, #tpu.memory_space<vmem>>, vector<1x4x32x8xf32>
    %17 = vector.shape_cast %16 : vector<1x4x32x8xf32> to vector<4x32x8xf32>
    %c0_15 = arith.constant 0 : index
    %c0_16 = arith.constant 0 : index
    %c0_17 = arith.constant 0 : index
    %c0_18 = arith.constant 0 : index
    %18 = vector.load %arg9[%c0_15, %c0_16, %c0_17, %c0_18] : memref<1x4x8x32xf32, #tpu.memory_space<vmem>>, vector<1x4x8x32xf32>
    %19 = vector.shape_cast %18 : vector<1x4x8x32xf32> to vector<4x8x32xf32>
    %c0_19 = arith.constant 0 : index
    %c0_20 = arith.constant 0 : index
    %c0_21 = arith.constant 0 : index
    %20 = vector.load %arg10[%c0_19, %c0_20, %c0_21] : memref<1x32x64xf32, #tpu.memory_space<vmem>>, vector<1x32x64xf32>
    %21 = vector.shape_cast %20 : vector<1x32x64xf32> to vector<32x64xf32>
    %c0_22 = arith.constant 0 : index
    %c0_23 = arith.constant 0 : index
    %c0_24 = arith.constant 0 : index
    %22 = vector.load %arg11[%c0_22, %c0_23, %c0_24] : memref<1x1x64xf32, #tpu.memory_space<vmem>>, vector<1x1x64xf32>
    %23 = vector.shape_cast %22 : vector<1x1x64xf32> to vector<1x64xf32>
    %c0_25 = arith.constant 0 : index
    %c0_26 = arith.constant 0 : index
    %c0_27 = arith.constant 0 : index
    %24 = vector.load %arg12[%c0_25, %c0_26, %c0_27] : memref<1x64x32xf32, #tpu.memory_space<vmem>>, vector<1x64x32xf32>
    %25 = vector.shape_cast %24 : vector<1x64x32xf32> to vector<64x32xf32>
    %c0_28 = arith.constant 0 : index
    %c0_29 = arith.constant 0 : index
    %c0_30 = arith.constant 0 : index
    %26 = vector.load %arg13[%c0_28, %c0_29, %c0_30] : memref<1x1x32xf32, #tpu.memory_space<vmem>>, vector<1x1x32xf32>
    %27 = vector.shape_cast %26 : vector<1x1x32xf32> to vector<1x32xf32>
    %cst = arith.constant dense<0.000000e+00> : vector<16xf32>
    %28 = vector.multi_reduction <add>, %3, %cst [1] : vector<16x32xf32> to vector<16xf32>
    %29 = vector.shape_cast %28 : vector<16xf32> to vector<16x1xf32>
    %cst_31 = arith.constant 3.200000e+01 : f32
    %30 = vector.broadcast %cst_31 : f32 to vector<16x1xf32>
    %31 = arith.divf %29, %30 : vector<16x1xf32>
    %32 = vector.broadcast %31 : vector<16x1xf32> to vector<16x32xf32>
    %33 = arith.subf %3, %32 : vector<16x32xf32>
    %34 = arith.mulf %33, %33 : vector<16x32xf32>
    %cst_32 = arith.constant dense<0.000000e+00> : vector<16xf32>
    %35 = vector.multi_reduction <add>, %34, %cst_32 [1] : vector<16x32xf32> to vector<16xf32>
    %36 = vector.shape_cast %35 : vector<16xf32> to vector<16x1xf32>
    %cst_33 = arith.constant 3.100000e+01 : f32
    %37 = vector.broadcast %cst_33 : f32 to vector<16x1xf32>
    %38 = arith.divf %36, %37 : vector<16x1xf32>
    %39 = math.sqrt %38 : vector<16x1xf32>
    %40 = vector.broadcast %31 : vector<16x1xf32> to vector<16x32xf32>
    %41 = arith.subf %3, %40 : vector<16x32xf32>
    %42 = vector.broadcast %5 : f32 to vector<16x32xf32>
    %43 = arith.mulf %42, %41 : vector<16x32xf32>
    %cst_34 = arith.constant 9.99999997E-7 : f32
    %44 = vector.broadcast %cst_34 : f32 to vector<16x1xf32>
    %45 = arith.addf %39, %44 : vector<16x1xf32>
    %46 = vector.broadcast %45 : vector<16x1xf32> to vector<16x32xf32>
    %47 = arith.divf %43, %46 : vector<16x32xf32>
    %48 = vector.broadcast %7 : f32 to vector<16x32xf32>
    %49 = arith.addf %47, %48 : vector<16x32xf32>
    %50 = vector.extract_strided_slice %13 {offsets = [0, 0, 0], sizes = [1, 32, 8], strides = [1, 1, 1]} : vector<4x32x8xf32> to vector<1x32x8xf32>
    %51 = vector.shape_cast %50 : vector<1x32x8xf32> to vector<32x8xf32>
    %cst_35 = arith.constant dense<0.000000e+00> : vector<16x8xf32>
    %52 = tpu.matmul %49, %51, %cst_35 {dimension_numbers = #tpu.dot_dimension_numbers<[1], [0], [0], [1], [0, 0, 1, 1], [], []>} : vector<16x32xf32>, vector<32x8xf32>, vector<16x8xf32> -> vector<16x8xf32>
    %53 = vector.extract_strided_slice %13 {offsets = [1, 0, 0], sizes = [1, 32, 8], strides = [1, 1, 1]} : vector<4x32x8xf32> to vector<1x32x8xf32>
    %54 = vector.shape_cast %53 : vector<1x32x8xf32> to vector<32x8xf32>
    %cst_36 = arith.constant dense<0.000000e+00> : vector<16x8xf32>
    %55 = tpu.matmul %49, %54, %cst_36 {dimension_numbers = #tpu.dot_dimension_numbers<[1], [0], [0], [1], [0, 0, 1, 1], [], []>} : vector<16x32xf32>, vector<32x8xf32>, vector<16x8xf32> -> vector<16x8xf32>
    %56 = vector.extract_strided_slice %13 {offsets = [2, 0, 0], sizes = [1, 32, 8], strides = [1, 1, 1]} : vector<4x32x8xf32> to vector<1x32x8xf32>
    %57 = vector.shape_cast %56 : vector<1x32x8xf32> to vector<32x8xf32>
    %cst_37 = arith.constant dense<0.000000e+00> : vector<16x8xf32>
    %58 = tpu.matmul %49, %57, %cst_37 {dimension_numbers = #tpu.dot_dimension_numbers<[1], [0], [0], [1], [0, 0, 1, 1], [], []>} : vector<16x32xf32>, vector<32x8xf32>, vector<16x8xf32> -> vector<16x8xf32>
    %59 = vector.extract_strided_slice %13 {offsets = [3, 0, 0], sizes = [1, 32, 8], strides = [1, 1, 1]} : vector<4x32x8xf32> to vector<1x32x8xf32>
    %60 = vector.shape_cast %59 : vector<1x32x8xf32> to vector<32x8xf32>
    %cst_38 = arith.constant dense<0.000000e+00> : vector<16x8xf32>
    %61 = tpu.matmul %49, %60, %cst_38 {dimension_numbers = #tpu.dot_dimension_numbers<[1], [0], [0], [1], [0, 0, 1, 1], [], []>} : vector<16x32xf32>, vector<32x8xf32>, vector<16x8xf32> -> vector<16x8xf32>
    %62 = vector.extract_strided_slice %15 {offsets = [0, 0, 0], sizes = [1, 32, 8], strides = [1, 1, 1]} : vector<4x32x8xf32> to vector<1x32x8xf32>
    %63 = vector.shape_cast %62 : vector<1x32x8xf32> to vector<32x8xf32>
    %cst_39 = arith.constant dense<0.000000e+00> : vector<16x8xf32>
    %64 = tpu.matmul %49, %63, %cst_39 {dimension_numbers = #tpu.dot_dimension_numbers<[1], [0], [0], [1], [0, 0, 1, 1], [], []>} : vector<16x32xf32>, vector<32x8xf32>, vector<16x8xf32> -> vector<16x8xf32>
    %65 = vector.extract_strided_slice %15 {offsets = [1, 0, 0], sizes = [1, 32, 8], strides = [1, 1, 1]} : vector<4x32x8xf32> to vector<1x32x8xf32>
    %66 = vector.shape_cast %65 : vector<1x32x8xf32> to vector<32x8xf32>
    %cst_40 = arith.constant dense<0.000000e+00> : vector<16x8xf32>
    %67 = tpu.matmul %49, %66, %cst_40 {dimension_numbers = #tpu.dot_dimension_numbers<[1], [0], [0], [1], [0, 0, 1, 1], [], []>} : vector<16x32xf32>, vector<32x8xf32>, vector<16x8xf32> -> vector<16x8xf32>
    %68 = vector.extract_strided_slice %15 {offsets = [2, 0, 0], sizes = [1, 32, 8], strides = [1, 1, 1]} : vector<4x32x8xf32> to vector<1x32x8xf32>
    %69 = vector.shape_cast %68 : vector<1x32x8xf32> to vector<32x8xf32>
    %cst_41 = arith.constant dense<0.000000e+00> : vector<16x8xf32>
    %70 = tpu.matmul %49, %69, %cst_41 {dimension_numbers = #tpu.dot_dimension_numbers<[1], [0], [0], [1], [0, 0, 1, 1], [], []>} : vector<16x32xf32>, vector<32x8xf32>, vector<16x8xf32> -> vector<16x8xf32>
    %71 = vector.extract_strided_slice %15 {offsets = [3, 0, 0], sizes = [1, 32, 8], strides = [1, 1, 1]} : vector<4x32x8xf32> to vector<1x32x8xf32>
    %72 = vector.shape_cast %71 : vector<1x32x8xf32> to vector<32x8xf32>
    %cst_42 = arith.constant dense<0.000000e+00> : vector<16x8xf32>
    %73 = tpu.matmul %49, %72, %cst_42 {dimension_numbers = #tpu.dot_dimension_numbers<[1], [0], [0], [1], [0, 0, 1, 1], [], []>} : vector<16x32xf32>, vector<32x8xf32>, vector<16x8xf32> -> vector<16x8xf32>
    %74 = vector.extract_strided_slice %17 {offsets = [0, 0, 0], sizes = [1, 32, 8], strides = [1, 1, 1]} : vector<4x32x8xf32> to vector<1x32x8xf32>
    %75 = vector.shape_cast %74 : vector<1x32x8xf32> to vector<32x8xf32>
    %cst_43 = arith.constant dense<0.000000e+00> : vector<16x8xf32>
    %76 = tpu.matmul %49, %75, %cst_43 {dimension_numbers = #tpu.dot_dimension_numbers<[1], [0], [0], [1], [0, 0, 1, 1], [], []>} : vector<16x32xf32>, vector<32x8xf32>, vector<16x8xf32> -> vector<16x8xf32>
    %77 = vector.extract_strided_slice %17 {offsets = [1, 0, 0], sizes = [1, 32, 8], strides = [1, 1, 1]} : vector<4x32x8xf32> to vector<1x32x8xf32>
    %78 = vector.shape_cast %77 : vector<1x32x8xf32> to vector<32x8xf32>
    %cst_44 = arith.constant dense<0.000000e+00> : vector<16x8xf32>
    %79 = tpu.matmul %49, %78, %cst_44 {dimension_numbers = #tpu.dot_dimension_numbers<[1], [0], [0], [1], [0, 0, 1, 1], [], []>} : vector<16x32xf32>, vector<32x8xf32>, vector<16x8xf32> -> vector<16x8xf32>
    %80 = vector.extract_strided_slice %17 {offsets = [2, 0, 0], sizes = [1, 32, 8], strides = [1, 1, 1]} : vector<4x32x8xf32> to vector<1x32x8xf32>
    %81 = vector.shape_cast %80 : vector<1x32x8xf32> to vector<32x8xf32>
    %cst_45 = arith.constant dense<0.000000e+00> : vector<16x8xf32>
    %82 = tpu.matmul %49, %81, %cst_45 {dimension_numbers = #tpu.dot_dimension_numbers<[1], [0], [0], [1], [0, 0, 1, 1], [], []>} : vector<16x32xf32>, vector<32x8xf32>, vector<16x8xf32> -> vector<16x8xf32>
    %83 = vector.extract_strided_slice %17 {offsets = [3, 0, 0], sizes = [1, 32, 8], strides = [1, 1, 1]} : vector<4x32x8xf32> to vector<1x32x8xf32>
    %84 = vector.shape_cast %83 : vector<1x32x8xf32> to vector<32x8xf32>
    %cst_46 = arith.constant dense<0.000000e+00> : vector<16x8xf32>
    %85 = tpu.matmul %49, %84, %cst_46 {dimension_numbers = #tpu.dot_dimension_numbers<[1], [0], [0], [1], [0, 0, 1, 1], [], []>} : vector<16x32xf32>, vector<32x8xf32>, vector<16x8xf32> -> vector<16x8xf32>
    %c0_47 = arith.constant 0 : index
    %c0_48 = arith.constant 0 : index
    %c0_49 = arith.constant 0 : index
    %86 = vector.load %arg5[%c0_47, %c0_48, %c0_49] : memref<2x1x8xf32, #tpu.memory_space<vmem>>, vector<1x1x8xf32>
    %87 = vector.shape_cast %86 : vector<1x1x8xf32> to vector<1x8xf32>
    %cst_50 = arith.constant 0.000000e+00 : f32
    %88 = vector.broadcast %cst_50 : f32 to vector<1x8xf32>
    %89 = arith.cmpf oeq, %87, %88 : vector<1x8xf32>
    %90 = vector.extract_strided_slice %52 {offsets = [0, 0], sizes = [8, 8], strides = [1, 1]} : vector<16x8xf32> to vector<8x8xf32>
    %91 = vector.extract_strided_slice %64 {offsets = [0, 0], sizes = [8, 8], strides = [1, 1]} : vector<16x8xf32> to vector<8x8xf32>
    %92 = tpu.transpose %91, [1, 0] : vector<8x8xf32> -> vector<8x8xf32>
    %cst_51 = arith.constant dense<0.000000e+00> : vector<8x8xf32>
    %93 = tpu.matmul %90, %92, %cst_51 {dimension_numbers = #tpu.dot_dimension_numbers<[1], [0], [0], [1], [0, 0, 1, 1], [], []>} : vector<8x8xf32>, vector<8x8xf32>, vector<8x8xf32> -> vector<8x8xf32>
    %cst_52 = arith.constant 0.353553385 : f32
    %94 = vector.broadcast %cst_52 : f32 to vector<8x8xf32>
    %95 = arith.mulf %93, %94 : vector<8x8xf32>
    %cst_53 = arith.constant -1.000000e+09 : f32
    %96 = vector.shape_cast %89 : vector<1x8xi1> to vector<1x8xi1>
    %97 = vector.broadcast %96 : vector<1x8xi1> to vector<8x8xi1>
    %98 = vector.broadcast %cst_53 : f32 to vector<8x8xf32>
    %99 = arith.select %97, %98, %95 : vector<8x8xi1>, vector<8x8xf32>
    %cst_54 = arith.constant dense<0xFF800000> : vector<8xf32>
    %100 = vector.multi_reduction <maximumf>, %99, %cst_54 [1] : vector<8x8xf32> to vector<8xf32>
    %101 = vector.shape_cast %100 : vector<8xf32> to vector<8x1xf32>
    %102 = vector.broadcast %101 : vector<8x1xf32> to vector<8x8xf32>
    %103 = arith.subf %99, %102 : vector<8x8xf32>
    %104 = math.exp %103 : vector<8x8xf32>
    %cst_55 = arith.constant dense<0.000000e+00> : vector<8xf32>
    %105 = vector.multi_reduction <add>, %104, %cst_55 [1] : vector<8x8xf32> to vector<8xf32>
    %106 = vector.shape_cast %105 : vector<8xf32> to vector<8x1xf32>
    %107 = vector.broadcast %106 : vector<8x1xf32> to vector<8x8xf32>
    %108 = arith.divf %104, %107 : vector<8x8xf32>
    %109 = vector.extract_strided_slice %76 {offsets = [0, 0], sizes = [8, 8], strides = [1, 1]} : vector<16x8xf32> to vector<8x8xf32>
    %cst_56 = arith.constant dense<0.000000e+00> : vector<8x8xf32>
    %110 = tpu.matmul %108, %109, %cst_56 {dimension_numbers = #tpu.dot_dimension_numbers<[1], [0], [0], [1], [0, 0, 1, 1], [], []>} : vector<8x8xf32>, vector<8x8xf32>, vector<8x8xf32> -> vector<8x8xf32>
    %111 = vector.extract_strided_slice %19 {offsets = [0, 0, 0], sizes = [1, 8, 32], strides = [1, 1, 1]} : vector<4x8x32xf32> to vector<1x8x32xf32>
    %112 = vector.shape_cast %111 : vector<1x8x32xf32> to vector<8x32xf32>
    %cst_57 = arith.constant dense<0.000000e+00> : vector<8x32xf32>
    %113 = tpu.matmul %110, %112, %cst_57 {dimension_numbers = #tpu.dot_dimension_numbers<[1], [0], [0], [1], [0, 0, 1, 1], [], []>} : vector<8x8xf32>, vector<8x32xf32>, vector<8x32xf32> -> vector<8x32xf32>
    %114 = vector.extract_strided_slice %55 {offsets = [0, 0], sizes = [8, 8], strides = [1, 1]} : vector<16x8xf32> to vector<8x8xf32>
    %115 = vector.extract_strided_slice %67 {offsets = [0, 0], sizes = [8, 8], strides = [1, 1]} : vector<16x8xf32> to vector<8x8xf32>
    %116 = tpu.transpose %115, [1, 0] : vector<8x8xf32> -> vector<8x8xf32>
    %cst_58 = arith.constant dense<0.000000e+00> : vector<8x8xf32>
    %117 = tpu.matmul %114, %116, %cst_58 {dimension_numbers = #tpu.dot_dimension_numbers<[1], [0], [0], [1], [0, 0, 1, 1], [], []>} : vector<8x8xf32>, vector<8x8xf32>, vector<8x8xf32> -> vector<8x8xf32>
    %cst_59 = arith.constant 0.353553385 : f32
    %118 = vector.broadcast %cst_59 : f32 to vector<8x8xf32>
    %119 = arith.mulf %117, %118 : vector<8x8xf32>
    %cst_60 = arith.constant -1.000000e+09 : f32
    %120 = vector.shape_cast %89 : vector<1x8xi1> to vector<1x8xi1>
    %121 = vector.broadcast %120 : vector<1x8xi1> to vector<8x8xi1>
    %122 = vector.broadcast %cst_60 : f32 to vector<8x8xf32>
    %123 = arith.select %121, %122, %119 : vector<8x8xi1>, vector<8x8xf32>
    %cst_61 = arith.constant dense<0xFF800000> : vector<8xf32>
    %124 = vector.multi_reduction <maximumf>, %123, %cst_61 [1] : vector<8x8xf32> to vector<8xf32>
    %125 = vector.shape_cast %124 : vector<8xf32> to vector<8x1xf32>
    %126 = vector.broadcast %125 : vector<8x1xf32> to vector<8x8xf32>
    %127 = arith.subf %123, %126 : vector<8x8xf32>
    %128 = math.exp %127 : vector<8x8xf32>
    %cst_62 = arith.constant dense<0.000000e+00> : vector<8xf32>
    %129 = vector.multi_reduction <add>, %128, %cst_62 [1] : vector<8x8xf32> to vector<8xf32>
    %130 = vector.shape_cast %129 : vector<8xf32> to vector<8x1xf32>
    %131 = vector.broadcast %130 : vector<8x1xf32> to vector<8x8xf32>
    %132 = arith.divf %128, %131 : vector<8x8xf32>
    %133 = vector.extract_strided_slice %79 {offsets = [0, 0], sizes = [8, 8], strides = [1, 1]} : vector<16x8xf32> to vector<8x8xf32>
    %cst_63 = arith.constant dense<0.000000e+00> : vector<8x8xf32>
    %134 = tpu.matmul %132, %133, %cst_63 {dimension_numbers = #tpu.dot_dimension_numbers<[1], [0], [0], [1], [0, 0, 1, 1], [], []>} : vector<8x8xf32>, vector<8x8xf32>, vector<8x8xf32> -> vector<8x8xf32>
    %135 = vector.extract_strided_slice %19 {offsets = [1, 0, 0], sizes = [1, 8, 32], strides = [1, 1, 1]} : vector<4x8x32xf32> to vector<1x8x32xf32>
    %136 = vector.shape_cast %135 : vector<1x8x32xf32> to vector<8x32xf32>
    %cst_64 = arith.constant dense<0.000000e+00> : vector<8x32xf32>
    %137 = tpu.matmul %134, %136, %cst_64 {dimension_numbers = #tpu.dot_dimension_numbers<[1], [0], [0], [1], [0, 0, 1, 1], [], []>} : vector<8x8xf32>, vector<8x32xf32>, vector<8x32xf32> -> vector<8x32xf32>
    %138 = arith.addf %113, %137 : vector<8x32xf32>
    %139 = vector.extract_strided_slice %58 {offsets = [0, 0], sizes = [8, 8], strides = [1, 1]} : vector<16x8xf32> to vector<8x8xf32>
    %140 = vector.extract_strided_slice %70 {offsets = [0, 0], sizes = [8, 8], strides = [1, 1]} : vector<16x8xf32> to vector<8x8xf32>
    %141 = tpu.transpose %140, [1, 0] : vector<8x8xf32> -> vector<8x8xf32>
    %cst_65 = arith.constant dense<0.000000e+00> : vector<8x8xf32>
    %142 = tpu.matmul %139, %141, %cst_65 {dimension_numbers = #tpu.dot_dimension_numbers<[1], [0], [0], [1], [0, 0, 1, 1], [], []>} : vector<8x8xf32>, vector<8x8xf32>, vector<8x8xf32> -> vector<8x8xf32>
    %cst_66 = arith.constant 0.353553385 : f32
    %143 = vector.broadcast %cst_66 : f32 to vector<8x8xf32>
    %144 = arith.mulf %142, %143 : vector<8x8xf32>
    %cst_67 = arith.constant -1.000000e+09 : f32
    %145 = vector.shape_cast %89 : vector<1x8xi1> to vector<1x8xi1>
    %146 = vector.broadcast %145 : vector<1x8xi1> to vector<8x8xi1>
    %147 = vector.broadcast %cst_67 : f32 to vector<8x8xf32>
    %148 = arith.select %146, %147, %144 : vector<8x8xi1>, vector<8x8xf32>
    %cst_68 = arith.constant dense<0xFF800000> : vector<8xf32>
    %149 = vector.multi_reduction <maximumf>, %148, %cst_68 [1] : vector<8x8xf32> to vector<8xf32>
    %150 = vector.shape_cast %149 : vector<8xf32> to vector<8x1xf32>
    %151 = vector.broadcast %150 : vector<8x1xf32> to vector<8x8xf32>
    %152 = arith.subf %148, %151 : vector<8x8xf32>
    %153 = math.exp %152 : vector<8x8xf32>
    %cst_69 = arith.constant dense<0.000000e+00> : vector<8xf32>
    %154 = vector.multi_reduction <add>, %153, %cst_69 [1] : vector<8x8xf32> to vector<8xf32>
    %155 = vector.shape_cast %154 : vector<8xf32> to vector<8x1xf32>
    %156 = vector.broadcast %155 : vector<8x1xf32> to vector<8x8xf32>
    %157 = arith.divf %153, %156 : vector<8x8xf32>
    %158 = vector.extract_strided_slice %82 {offsets = [0, 0], sizes = [8, 8], strides = [1, 1]} : vector<16x8xf32> to vector<8x8xf32>
    %cst_70 = arith.constant dense<0.000000e+00> : vector<8x8xf32>
    %159 = tpu.matmul %157, %158, %cst_70 {dimension_numbers = #tpu.dot_dimension_numbers<[1], [0], [0], [1], [0, 0, 1, 1], [], []>} : vector<8x8xf32>, vector<8x8xf32>, vector<8x8xf32> -> vector<8x8xf32>
    %160 = vector.extract_strided_slice %19 {offsets = [2, 0, 0], sizes = [1, 8, 32], strides = [1, 1, 1]} : vector<4x8x32xf32> to vector<1x8x32xf32>
    %161 = vector.shape_cast %160 : vector<1x8x32xf32> to vector<8x32xf32>
    %cst_71 = arith.constant dense<0.000000e+00> : vector<8x32xf32>
    %162 = tpu.matmul %159, %161, %cst_71 {dimension_numbers = #tpu.dot_dimension_numbers<[1], [0], [0], [1], [0, 0, 1, 1], [], []>} : vector<8x8xf32>, vector<8x32xf32>, vector<8x32xf32> -> vector<8x32xf32>
    %163 = arith.addf %138, %162 : vector<8x32xf32>
    %164 = vector.extract_strided_slice %61 {offsets = [0, 0], sizes = [8, 8], strides = [1, 1]} : vector<16x8xf32> to vector<8x8xf32>
    %165 = vector.extract_strided_slice %73 {offsets = [0, 0], sizes = [8, 8], strides = [1, 1]} : vector<16x8xf32> to vector<8x8xf32>
    %166 = tpu.transpose %165, [1, 0] : vector<8x8xf32> -> vector<8x8xf32>
    %cst_72 = arith.constant dense<0.000000e+00> : vector<8x8xf32>
    %167 = tpu.matmul %164, %166, %cst_72 {dimension_numbers = #tpu.dot_dimension_numbers<[1], [0], [0], [1], [0, 0, 1, 1], [], []>} : vector<8x8xf32>, vector<8x8xf32>, vector<8x8xf32> -> vector<8x8xf32>
    %cst_73 = arith.constant 0.353553385 : f32
    %168 = vector.broadcast %cst_73 : f32 to vector<8x8xf32>
    %169 = arith.mulf %167, %168 : vector<8x8xf32>
    %cst_74 = arith.constant -1.000000e+09 : f32
    %170 = vector.shape_cast %89 : vector<1x8xi1> to vector<1x8xi1>
    %171 = vector.broadcast %170 : vector<1x8xi1> to vector<8x8xi1>
    %172 = vector.broadcast %cst_74 : f32 to vector<8x8xf32>
    %173 = arith.select %171, %172, %169 : vector<8x8xi1>, vector<8x8xf32>
    %cst_75 = arith.constant dense<0xFF800000> : vector<8xf32>
    %174 = vector.multi_reduction <maximumf>, %173, %cst_75 [1] : vector<8x8xf32> to vector<8xf32>
    %175 = vector.shape_cast %174 : vector<8xf32> to vector<8x1xf32>
    %176 = vector.broadcast %175 : vector<8x1xf32> to vector<8x8xf32>
    %177 = arith.subf %173, %176 : vector<8x8xf32>
    %178 = math.exp %177 : vector<8x8xf32>
    %cst_76 = arith.constant dense<0.000000e+00> : vector<8xf32>
    %179 = vector.multi_reduction <add>, %178, %cst_76 [1] : vector<8x8xf32> to vector<8xf32>
    %180 = vector.shape_cast %179 : vector<8xf32> to vector<8x1xf32>
    %181 = vector.broadcast %180 : vector<8x1xf32> to vector<8x8xf32>
    %182 = arith.divf %178, %181 : vector<8x8xf32>
    %183 = vector.extract_strided_slice %85 {offsets = [0, 0], sizes = [8, 8], strides = [1, 1]} : vector<16x8xf32> to vector<8x8xf32>
    %cst_77 = arith.constant dense<0.000000e+00> : vector<8x8xf32>
    %184 = tpu.matmul %182, %183, %cst_77 {dimension_numbers = #tpu.dot_dimension_numbers<[1], [0], [0], [1], [0, 0, 1, 1], [], []>} : vector<8x8xf32>, vector<8x8xf32>, vector<8x8xf32> -> vector<8x8xf32>
    %185 = vector.extract_strided_slice %19 {offsets = [3, 0, 0], sizes = [1, 8, 32], strides = [1, 1, 1]} : vector<4x8x32xf32> to vector<1x8x32xf32>
    %186 = vector.shape_cast %185 : vector<1x8x32xf32> to vector<8x32xf32>
    %cst_78 = arith.constant dense<0.000000e+00> : vector<8x32xf32>
    %187 = tpu.matmul %184, %186, %cst_78 {dimension_numbers = #tpu.dot_dimension_numbers<[1], [0], [0], [1], [0, 0, 1, 1], [], []>} : vector<8x8xf32>, vector<8x32xf32>, vector<8x32xf32> -> vector<8x32xf32>
    %188 = arith.addf %163, %187 : vector<8x32xf32>
    %c1_79 = arith.constant 1 : index
    %c0_80 = arith.constant 0 : index
    %c0_81 = arith.constant 0 : index
    %189 = vector.load %arg5[%c1_79, %c0_80, %c0_81] : memref<2x1x8xf32, #tpu.memory_space<vmem>>, vector<1x1x8xf32>
    %190 = vector.shape_cast %189 : vector<1x1x8xf32> to vector<1x8xf32>
    %cst_82 = arith.constant 0.000000e+00 : f32
    %191 = vector.broadcast %cst_82 : f32 to vector<1x8xf32>
    %192 = arith.cmpf oeq, %190, %191 : vector<1x8xf32>
    %193 = vector.extract_strided_slice %52 {offsets = [8, 0], sizes = [8, 8], strides = [1, 1]} : vector<16x8xf32> to vector<8x8xf32>
    %194 = vector.extract_strided_slice %64 {offsets = [8, 0], sizes = [8, 8], strides = [1, 1]} : vector<16x8xf32> to vector<8x8xf32>
    %195 = tpu.transpose %194, [1, 0] : vector<8x8xf32> -> vector<8x8xf32>
    %cst_83 = arith.constant dense<0.000000e+00> : vector<8x8xf32>
    %196 = tpu.matmul %193, %195, %cst_83 {dimension_numbers = #tpu.dot_dimension_numbers<[1], [0], [0], [1], [0, 0, 1, 1], [], []>} : vector<8x8xf32>, vector<8x8xf32>, vector<8x8xf32> -> vector<8x8xf32>
    %cst_84 = arith.constant 0.353553385 : f32
    %197 = vector.broadcast %cst_84 : f32 to vector<8x8xf32>
    %198 = arith.mulf %196, %197 : vector<8x8xf32>
    %cst_85 = arith.constant -1.000000e+09 : f32
    %199 = vector.shape_cast %192 : vector<1x8xi1> to vector<1x8xi1>
    %200 = vector.broadcast %199 : vector<1x8xi1> to vector<8x8xi1>
    %201 = vector.broadcast %cst_85 : f32 to vector<8x8xf32>
    %202 = arith.select %200, %201, %198 : vector<8x8xi1>, vector<8x8xf32>
    %cst_86 = arith.constant dense<0xFF800000> : vector<8xf32>
    %203 = vector.multi_reduction <maximumf>, %202, %cst_86 [1] : vector<8x8xf32> to vector<8xf32>
    %204 = vector.shape_cast %203 : vector<8xf32> to vector<8x1xf32>
    %205 = vector.broadcast %204 : vector<8x1xf32> to vector<8x8xf32>
    %206 = arith.subf %202, %205 : vector<8x8xf32>
    %207 = math.exp %206 : vector<8x8xf32>
    %cst_87 = arith.constant dense<0.000000e+00> : vector<8xf32>
    %208 = vector.multi_reduction <add>, %207, %cst_87 [1] : vector<8x8xf32> to vector<8xf32>
    %209 = vector.shape_cast %208 : vector<8xf32> to vector<8x1xf32>
    %210 = vector.broadcast %209 : vector<8x1xf32> to vector<8x8xf32>
    %211 = arith.divf %207, %210 : vector<8x8xf32>
    %212 = vector.extract_strided_slice %76 {offsets = [8, 0], sizes = [8, 8], strides = [1, 1]} : vector<16x8xf32> to vector<8x8xf32>
    %cst_88 = arith.constant dense<0.000000e+00> : vector<8x8xf32>
    %213 = tpu.matmul %211, %212, %cst_88 {dimension_numbers = #tpu.dot_dimension_numbers<[1], [0], [0], [1], [0, 0, 1, 1], [], []>} : vector<8x8xf32>, vector<8x8xf32>, vector<8x8xf32> -> vector<8x8xf32>
    %214 = vector.extract_strided_slice %19 {offsets = [0, 0, 0], sizes = [1, 8, 32], strides = [1, 1, 1]} : vector<4x8x32xf32> to vector<1x8x32xf32>
    %215 = vector.shape_cast %214 : vector<1x8x32xf32> to vector<8x32xf32>
    %cst_89 = arith.constant dense<0.000000e+00> : vector<8x32xf32>
    %216 = tpu.matmul %213, %215, %cst_89 {dimension_numbers = #tpu.dot_dimension_numbers<[1], [0], [0], [1], [0, 0, 1, 1], [], []>} : vector<8x8xf32>, vector<8x32xf32>, vector<8x32xf32> -> vector<8x32xf32>
    %217 = vector.extract_strided_slice %55 {offsets = [8, 0], sizes = [8, 8], strides = [1, 1]} : vector<16x8xf32> to vector<8x8xf32>
    %218 = vector.extract_strided_slice %67 {offsets = [8, 0], sizes = [8, 8], strides = [1, 1]} : vector<16x8xf32> to vector<8x8xf32>
    %219 = tpu.transpose %218, [1, 0] : vector<8x8xf32> -> vector<8x8xf32>
    %cst_90 = arith.constant dense<0.000000e+00> : vector<8x8xf32>
    %220 = tpu.matmul %217, %219, %cst_90 {dimension_numbers = #tpu.dot_dimension_numbers<[1], [0], [0], [1], [0, 0, 1, 1], [], []>} : vector<8x8xf32>, vector<8x8xf32>, vector<8x8xf32> -> vector<8x8xf32>
    %cst_91 = arith.constant 0.353553385 : f32
    %221 = vector.broadcast %cst_91 : f32 to vector<8x8xf32>
    %222 = arith.mulf %220, %221 : vector<8x8xf32>
    %cst_92 = arith.constant -1.000000e+09 : f32
    %223 = vector.shape_cast %192 : vector<1x8xi1> to vector<1x8xi1>
    %224 = vector.broadcast %223 : vector<1x8xi1> to vector<8x8xi1>
    %225 = vector.broadcast %cst_92 : f32 to vector<8x8xf32>
    %226 = arith.select %224, %225, %222 : vector<8x8xi1>, vector<8x8xf32>
    %cst_93 = arith.constant dense<0xFF800000> : vector<8xf32>
    %227 = vector.multi_reduction <maximumf>, %226, %cst_93 [1] : vector<8x8xf32> to vector<8xf32>
    %228 = vector.shape_cast %227 : vector<8xf32> to vector<8x1xf32>
    %229 = vector.broadcast %228 : vector<8x1xf32> to vector<8x8xf32>
    %230 = arith.subf %226, %229 : vector<8x8xf32>
    %231 = math.exp %230 : vector<8x8xf32>
    %cst_94 = arith.constant dense<0.000000e+00> : vector<8xf32>
    %232 = vector.multi_reduction <add>, %231, %cst_94 [1] : vector<8x8xf32> to vector<8xf32>
    %233 = vector.shape_cast %232 : vector<8xf32> to vector<8x1xf32>
    %234 = vector.broadcast %233 : vector<8x1xf32> to vector<8x8xf32>
    %235 = arith.divf %231, %234 : vector<8x8xf32>
    %236 = vector.extract_strided_slice %79 {offsets = [8, 0], sizes = [8, 8], strides = [1, 1]} : vector<16x8xf32> to vector<8x8xf32>
    %cst_95 = arith.constant dense<0.000000e+00> : vector<8x8xf32>
    %237 = tpu.matmul %235, %236, %cst_95 {dimension_numbers = #tpu.dot_dimension_numbers<[1], [0], [0], [1], [0, 0, 1, 1], [], []>} : vector<8x8xf32>, vector<8x8xf32>, vector<8x8xf32> -> vector<8x8xf32>
    %238 = vector.extract_strided_slice %19 {offsets = [1, 0, 0], sizes = [1, 8, 32], strides = [1, 1, 1]} : vector<4x8x32xf32> to vector<1x8x32xf32>
    %239 = vector.shape_cast %238 : vector<1x8x32xf32> to vector<8x32xf32>
    %cst_96 = arith.constant dense<0.000000e+00> : vector<8x32xf32>
    %240 = tpu.matmul %237, %239, %cst_96 {dimension_numbers = #tpu.dot_dimension_numbers<[1], [0], [0], [1], [0, 0, 1, 1], [], []>} : vector<8x8xf32>, vector<8x32xf32>, vector<8x32xf32> -> vector<8x32xf32>
    %241 = arith.addf %216, %240 : vector<8x32xf32>
    %242 = vector.extract_strided_slice %58 {offsets = [8, 0], sizes = [8, 8], strides = [1, 1]} : vector<16x8xf32> to vector<8x8xf32>
    %243 = vector.extract_strided_slice %70 {offsets = [8, 0], sizes = [8, 8], strides = [1, 1]} : vector<16x8xf32> to vector<8x8xf32>
    %244 = tpu.transpose %243, [1, 0] : vector<8x8xf32> -> vector<8x8xf32>
    %cst_97 = arith.constant dense<0.000000e+00> : vector<8x8xf32>
    %245 = tpu.matmul %242, %244, %cst_97 {dimension_numbers = #tpu.dot_dimension_numbers<[1], [0], [0], [1], [0, 0, 1, 1], [], []>} : vector<8x8xf32>, vector<8x8xf32>, vector<8x8xf32> -> vector<8x8xf32>
    %cst_98 = arith.constant 0.353553385 : f32
    %246 = vector.broadcast %cst_98 : f32 to vector<8x8xf32>
    %247 = arith.mulf %245, %246 : vector<8x8xf32>
    %cst_99 = arith.constant -1.000000e+09 : f32
    %248 = vector.shape_cast %192 : vector<1x8xi1> to vector<1x8xi1>
    %249 = vector.broadcast %248 : vector<1x8xi1> to vector<8x8xi1>
    %250 = vector.broadcast %cst_99 : f32 to vector<8x8xf32>
    %251 = arith.select %249, %250, %247 : vector<8x8xi1>, vector<8x8xf32>
    %cst_100 = arith.constant dense<0xFF800000> : vector<8xf32>
    %252 = vector.multi_reduction <maximumf>, %251, %cst_100 [1] : vector<8x8xf32> to vector<8xf32>
    %253 = vector.shape_cast %252 : vector<8xf32> to vector<8x1xf32>
    %254 = vector.broadcast %253 : vector<8x1xf32> to vector<8x8xf32>
    %255 = arith.subf %251, %254 : vector<8x8xf32>
    %256 = math.exp %255 : vector<8x8xf32>
    %cst_101 = arith.constant dense<0.000000e+00> : vector<8xf32>
    %257 = vector.multi_reduction <add>, %256, %cst_101 [1] : vector<8x8xf32> to vector<8xf32>
    %258 = vector.shape_cast %257 : vector<8xf32> to vector<8x1xf32>
    %259 = vector.broadcast %258 : vector<8x1xf32> to vector<8x8xf32>
    %260 = arith.divf %256, %259 : vector<8x8xf32>
    %261 = vector.extract_strided_slice %82 {offsets = [8, 0], sizes = [8, 8], strides = [1, 1]} : vector<16x8xf32> to vector<8x8xf32>
    %cst_102 = arith.constant dense<0.000000e+00> : vector<8x8xf32>
    %262 = tpu.matmul %260, %261, %cst_102 {dimension_numbers = #tpu.dot_dimension_numbers<[1], [0], [0], [1], [0, 0, 1, 1], [], []>} : vector<8x8xf32>, vector<8x8xf32>, vector<8x8xf32> -> vector<8x8xf32>
    %263 = vector.extract_strided_slice %19 {offsets = [2, 0, 0], sizes = [1, 8, 32], strides = [1, 1, 1]} : vector<4x8x32xf32> to vector<1x8x32xf32>
    %264 = vector.shape_cast %263 : vector<1x8x32xf32> to vector<8x32xf32>
    %cst_103 = arith.constant dense<0.000000e+00> : vector<8x32xf32>
    %265 = tpu.matmul %262, %264, %cst_103 {dimension_numbers = #tpu.dot_dimension_numbers<[1], [0], [0], [1], [0, 0, 1, 1], [], []>} : vector<8x8xf32>, vector<8x32xf32>, vector<8x32xf32> -> vector<8x32xf32>
    %266 = arith.addf %241, %265 : vector<8x32xf32>
    %267 = vector.extract_strided_slice %61 {offsets = [8, 0], sizes = [8, 8], strides = [1, 1]} : vector<16x8xf32> to vector<8x8xf32>
    %268 = vector.extract_strided_slice %73 {offsets = [8, 0], sizes = [8, 8], strides = [1, 1]} : vector<16x8xf32> to vector<8x8xf32>
    %269 = tpu.transpose %268, [1, 0] : vector<8x8xf32> -> vector<8x8xf32>
    %cst_104 = arith.constant dense<0.000000e+00> : vector<8x8xf32>
    %270 = tpu.matmul %267, %269, %cst_104 {dimension_numbers = #tpu.dot_dimension_numbers<[1], [0], [0], [1], [0, 0, 1, 1], [], []>} : vector<8x8xf32>, vector<8x8xf32>, vector<8x8xf32> -> vector<8x8xf32>
    %cst_105 = arith.constant 0.353553385 : f32
    %271 = vector.broadcast %cst_105 : f32 to vector<8x8xf32>
    %272 = arith.mulf %270, %271 : vector<8x8xf32>
    %cst_106 = arith.constant -1.000000e+09 : f32
    %273 = vector.shape_cast %192 : vector<1x8xi1> to vector<1x8xi1>
    %274 = vector.broadcast %273 : vector<1x8xi1> to vector<8x8xi1>
    %275 = vector.broadcast %cst_106 : f32 to vector<8x8xf32>
    %276 = arith.select %274, %275, %272 : vector<8x8xi1>, vector<8x8xf32>
    %cst_107 = arith.constant dense<0xFF800000> : vector<8xf32>
    %277 = vector.multi_reduction <maximumf>, %276, %cst_107 [1] : vector<8x8xf32> to vector<8xf32>
    %278 = vector.shape_cast %277 : vector<8xf32> to vector<8x1xf32>
    %279 = vector.broadcast %278 : vector<8x1xf32> to vector<8x8xf32>
    %280 = arith.subf %276, %279 : vector<8x8xf32>
    %281 = math.exp %280 : vector<8x8xf32>
    %cst_108 = arith.constant dense<0.000000e+00> : vector<8xf32>
    %282 = vector.multi_reduction <add>, %281, %cst_108 [1] : vector<8x8xf32> to vector<8xf32>
    %283 = vector.shape_cast %282 : vector<8xf32> to vector<8x1xf32>
    %284 = vector.broadcast %283 : vector<8x1xf32> to vector<8x8xf32>
    %285 = arith.divf %281, %284 : vector<8x8xf32>
    %286 = vector.extract_strided_slice %85 {offsets = [8, 0], sizes = [8, 8], strides = [1, 1]} : vector<16x8xf32> to vector<8x8xf32>
    %cst_109 = arith.constant dense<0.000000e+00> : vector<8x8xf32>
    %287 = tpu.matmul %285, %286, %cst_109 {dimension_numbers = #tpu.dot_dimension_numbers<[1], [0], [0], [1], [0, 0, 1, 1], [], []>} : vector<8x8xf32>, vector<8x8xf32>, vector<8x8xf32> -> vector<8x8xf32>
    %288 = vector.extract_strided_slice %19 {offsets = [3, 0, 0], sizes = [1, 8, 32], strides = [1, 1, 1]} : vector<4x8x32xf32> to vector<1x8x32xf32>
    %289 = vector.shape_cast %288 : vector<1x8x32xf32> to vector<8x32xf32>
    %cst_110 = arith.constant dense<0.000000e+00> : vector<8x32xf32>
    %290 = tpu.matmul %287, %289, %cst_110 {dimension_numbers = #tpu.dot_dimension_numbers<[1], [0], [0], [1], [0, 0, 1, 1], [], []>} : vector<8x8xf32>, vector<8x32xf32>, vector<8x32xf32> -> vector<8x32xf32>
    %291 = arith.addf %266, %290 : vector<8x32xf32>
    %292 = tpu.concatenate %188, %291 in 0 : vector<8x32xf32>, vector<8x32xf32> -> vector<16x32xf32>
    %293 = arith.addf %3, %292 : vector<16x32xf32>
    %cst_111 = arith.constant dense<0.000000e+00> : vector<16xf32>
    %294 = vector.multi_reduction <add>, %293, %cst_111 [1] : vector<16x32xf32> to vector<16xf32>
    %295 = vector.shape_cast %294 : vector<16xf32> to vector<16x1xf32>
    %cst_112 = arith.constant 3.200000e+01 : f32
    %296 = vector.broadcast %cst_112 : f32 to vector<16x1xf32>
    %297 = arith.divf %295, %296 : vector<16x1xf32>
    %298 = vector.broadcast %297 : vector<16x1xf32> to vector<16x32xf32>
    %299 = arith.subf %293, %298 : vector<16x32xf32>
    %300 = arith.mulf %299, %299 : vector<16x32xf32>
    %cst_113 = arith.constant dense<0.000000e+00> : vector<16xf32>
    %301 = vector.multi_reduction <add>, %300, %cst_113 [1] : vector<16x32xf32> to vector<16xf32>
    %302 = vector.shape_cast %301 : vector<16xf32> to vector<16x1xf32>
    %cst_114 = arith.constant 3.100000e+01 : f32
    %303 = vector.broadcast %cst_114 : f32 to vector<16x1xf32>
    %304 = arith.divf %302, %303 : vector<16x1xf32>
    %305 = math.sqrt %304 : vector<16x1xf32>
    %306 = vector.broadcast %297 : vector<16x1xf32> to vector<16x32xf32>
    %307 = arith.subf %293, %306 : vector<16x32xf32>
    %308 = vector.broadcast %9 : f32 to vector<16x32xf32>
    %309 = arith.mulf %308, %307 : vector<16x32xf32>
    %cst_115 = arith.constant 9.99999997E-7 : f32
    %310 = vector.broadcast %cst_115 : f32 to vector<16x1xf32>
    %311 = arith.addf %305, %310 : vector<16x1xf32>
    %312 = vector.broadcast %311 : vector<16x1xf32> to vector<16x32xf32>
    %313 = arith.divf %309, %312 : vector<16x32xf32>
    %314 = vector.broadcast %11 : f32 to vector<16x32xf32>
    %315 = arith.addf %313, %314 : vector<16x32xf32>
    %cst_116 = arith.constant dense<0.000000e+00> : vector<16x64xf32>
    %316 = tpu.matmul %315, %21, %cst_116 {dimension_numbers = #tpu.dot_dimension_numbers<[1], [0], [0], [1], [0, 0, 1, 1], [], []>} : vector<16x32xf32>, vector<32x64xf32>, vector<16x64xf32> -> vector<16x64xf32>
    %317 = vector.broadcast %23 : vector<1x64xf32> to vector<16x64xf32>
    %318 = arith.addf %316, %317 : vector<16x64xf32>
    %cst_117 = arith.constant 0.000000e+00 : f32
    %319 = vector.broadcast %cst_117 : f32 to vector<16x64xf32>
    %320 = arith.maximumf %318, %319 : vector<16x64xf32>
    %cst_118 = arith.constant dense<0.000000e+00> : vector<16x32xf32>
    %321 = tpu.matmul %320, %25, %cst_118 {dimension_numbers = #tpu.dot_dimension_numbers<[1], [0], [0], [1], [0, 0, 1, 1], [], []>} : vector<16x64xf32>, vector<64x32xf32>, vector<16x32xf32> -> vector<16x32xf32>
    %322 = vector.broadcast %27 : vector<1x32xf32> to vector<16x32xf32>
    %323 = arith.addf %321, %322 : vector<16x32xf32>
    %324 = arith.addf %293, %323 : vector<16x32xf32>
    %c0_119 = arith.constant 0 : index
    %c0_120 = arith.constant 0 : index
    %325 = vector.load %arg15[%c0_119, %c0_120] : memref<16x32xf32, #tpu.memory_space<vmem>>, vector<16x32xf32>
    tpu.vector_store %arg15[%c0_119, %c0_120], %324 {strides = array<i32>} : memref<16x32xf32, #tpu.memory_space<vmem>>, vector<16x32xf32>,
    %c1_i32 = arith.constant 1 : i32
    %326 = arith.cmpi eq, %arg1, %c1_i32 : i32
    %327 = arith.extui %326 : i1 to i32
    %c0_i32_121 = arith.constant 0 : i32
    %328 = arith.cmpi ne, %327, %c0_i32_121 : i32
    scf.if %328 {
      %c0_122 = arith.constant 0 : index
      %329 = memref.load %arg3[%c0_122] : memref<2xf32, #tpu.memory_space<smem>>
      %c1_123 = arith.constant 1 : index
      %330 = memref.load %arg3[%c1_123] : memref<2xf32, #tpu.memory_space<smem>>
      %cst_124 = arith.constant dense<0.000000e+00> : vector<16xf32>
      %331 = vector.multi_reduction <add>, %324, %cst_124 [1] : vector<16x32xf32> to vector<16xf32>
      %332 = vector.shape_cast %331 : vector<16xf32> to vector<16x1xf32>
      %cst_125 = arith.constant 3.200000e+01 : f32
      %333 = vector.broadcast %cst_125 : f32 to vector<16x1xf32>
      %334 = arith.divf %332, %333 : vector<16x1xf32>
      %335 = vector.broadcast %334 : vector<16x1xf32> to vector<16x32xf32>
      %336 = arith.subf %324, %335 : vector<16x32xf32>
      %337 = arith.mulf %336, %336 : vector<16x32xf32>
      %cst_126 = arith.constant dense<0.000000e+00> : vector<16xf32>
      %338 = vector.multi_reduction <add>, %337, %cst_126 [1] : vector<16x32xf32> to vector<16xf32>
      %339 = vector.shape_cast %338 : vector<16xf32> to vector<16x1xf32>
      %cst_127 = arith.constant 3.100000e+01 : f32
      %340 = vector.broadcast %cst_127 : f32 to vector<16x1xf32>
      %341 = arith.divf %339, %340 : vector<16x1xf32>
      %342 = math.sqrt %341 : vector<16x1xf32>
      %343 = vector.broadcast %334 : vector<16x1xf32> to vector<16x32xf32>
      %344 = arith.subf %324, %343 : vector<16x32xf32>
      %345 = vector.broadcast %329 : f32 to vector<16x32xf32>
      %346 = arith.mulf %345, %344 : vector<16x32xf32>
      %cst_128 = arith.constant 9.99999997E-7 : f32
      %347 = vector.broadcast %cst_128 : f32 to vector<16x1xf32>
      %348 = arith.addf %342, %347 : vector<16x1xf32>
      %349 = vector.broadcast %348 : vector<16x1xf32> to vector<16x32xf32>
      %350 = arith.divf %346, %349 : vector<16x32xf32>
      %351 = vector.broadcast %330 : f32 to vector<16x32xf32>
      %352 = arith.addf %350, %351 : vector<16x32xf32>
      %353 = vector.shape_cast %352 : vector<16x32xf32> to vector<2x8x32xf32>
      %c0_129 = arith.constant 0 : index
      %c0_130 = arith.constant 0 : index
      %c0_131 = arith.constant 0 : index
      %354 = vector.load %arg14[%c0_129, %c0_130, %c0_131] : memref<2x8x32xf32, #tpu.memory_space<vmem>>, vector<2x8x32xf32>
      tpu.vector_store %arg14[%c0_129, %c0_130, %c0_131], %353 {strides = array<i32>} : memref<2x8x32xf32, #tpu.memory_space<vmem>>, vector<2x8x32xf32>,
    } else {
    }
    return
  }
  func.func @transform_0(%arg0: i32, %arg1: i32) -> (i32, i32) {
    %c0_i32 = arith.constant 0 : i32
    %c0_i32_0 = arith.constant 0 : i32
    %c0_i32_1 = arith.constant 0 : i32
    return %c0_i32, %c0_i32_0 : i32, i32
  }
  func.func @transform_1(%arg0: i32, %arg1: i32) -> i32 {
    %c0_i32 = arith.constant 0 : i32
    %c0_i32_0 = arith.constant 0 : i32
    return %c0_i32 : i32
  }
  func.func @transform_2(%arg0: i32, %arg1: i32) -> (i32, i32, i32) {
    %c0_i32 = arith.constant 0 : i32
    %c0_i32_0 = arith.constant 0 : i32
    %c0_i32_1 = arith.constant 0 : i32
    return %arg0, %c0_i32, %c0_i32_0 : i32, i32, i32
  }
  func.func @transform_3(%arg0: i32, %arg1: i32) -> (i32, i32, i32) {
    %c0_i32 = arith.constant 0 : i32
    %c0_i32_0 = arith.constant 0 : i32
    %c0_i32_1 = arith.constant 0 : i32
    return %arg0, %c0_i32, %c0_i32_0 : i32, i32, i32
  }
  func.func @transform_4(%arg0: i32, %arg1: i32) -> (i32, i32, i32, i32) {
    %c0_i32 = arith.constant 0 : i32
    %c0_i32_0 = arith.constant 0 : i32
    %c0_i32_1 = arith.constant 0 : i32
    %c0_i32_2 = arith.constant 0 : i32
    return %arg1, %c0_i32, %c0_i32_0, %c0_i32_1 : i32, i32, i32, i32
  }
  func.func @transform_5(%arg0: i32, %arg1: i32) -> (i32, i32, i32, i32) {
    %c0_i32 = arith.constant 0 : i32
    %c0_i32_0 = arith.constant 0 : i32
    %c0_i32_1 = arith.constant 0 : i32
    %c0_i32_2 = arith.constant 0 : i32
    return %arg1, %c0_i32, %c0_i32_0, %c0_i32_1 : i32, i32, i32, i32
  }
  func.func @transform_6(%arg0: i32, %arg1: i32) -> (i32, i32, i32, i32) {
    %c0_i32 = arith.constant 0 : i32
    %c0_i32_0 = arith.constant 0 : i32
    %c0_i32_1 = arith.constant 0 : i32
    %c0_i32_2 = arith.constant 0 : i32
    return %arg1, %c0_i32, %c0_i32_0, %c0_i32_1 : i32, i32, i32, i32
  }
  func.func @transform_7(%arg0: i32, %arg1: i32) -> (i32, i32, i32, i32) {
    %c0_i32 = arith.constant 0 : i32
    %c0_i32_0 = arith.constant 0 : i32
    %c0_i32_1 = arith.constant 0 : i32
    %c0_i32_2 = arith.constant 0 : i32
    return %arg1, %c0_i32, %c0_i32_0, %c0_i32_1 : i32, i32, i32, i32
  }
  func.func @transform_8(%arg0: i32, %arg1: i32) -> (i32, i32, i32) {
    %c0_i32 = arith.constant 0 : i32
    %c0_i32_0 = arith.constant 0 : i32
    %c0_i32_1 = arith.constant 0 : i32
    return %arg1, %c0_i32, %c0_i32_0 : i32, i32, i32
  }
  func.func @transform_9(%arg0: i32, %arg1: i32) -> (i32, i32, i32) {
    %c0_i32 = arith.constant 0 : i32
    %c0_i32_0 = arith.constant 0 : i32
    %c0_i32_1 = arith.constant 0 : i32
    return %arg1, %c0_i32, %c0_i32_0 : i32, i32, i32
  }
  func.func @transform_10(%arg0: i32, %arg1: i32) -> (i32, i32, i32) {
    %c0_i32 = arith.constant 0 : i32
    %c0_i32_0 = arith.constant 0 : i32
    %c0_i32_1 = arith.constant 0 : i32
    return %arg1, %c0_i32, %c0_i32_0 : i32, i32, i32
  }
  func.func @transform_11(%arg0: i32, %arg1: i32) -> (i32, i32, i32) {
    %c0_i32 = arith.constant 0 : i32
    %c0_i32_0 = arith.constant 0 : i32
    %c0_i32_1 = arith.constant 0 : i32
    return %arg1, %c0_i32, %c0_i32_0 : i32, i32, i32
  }
  func.func @transform_12(%arg0: i32, %arg1: i32) -> (i32, i32, i32) {
    %c0_i32 = arith.constant 0 : i32
    %c0_i32_0 = arith.constant 0 : i32
    %c0_i32_1 = arith.constant 0 : i32
    return %arg0, %c0_i32, %c0_i32_0 : i32, i32, i32
  }
}

</mosaic_0001>

<llo_original>
// kernel: tpu_custom_call.1
$region0: #{tpu_custom_call.1}
  #allocation0 [shape = 'u32[]', space=smem, size = 0x4, offset = 0x4, fixed_abs, tag = 'smem constant byte address 0x4 - core index']
  #allocation1 [shape = 'u32[72,128]{1,0:T(1,128)}', space=vmem, size = 0x9000, scoped, tag = 'internal scratch']
  #allocation2 [shape = 'f32[16,32]{1,0:T(8,128)}', space=vmem, size = 0x2000, scoped, tag = 'scratch operand']
  %s0 = inlined_call_operand.vmem [shape: f32[2,4], index: 0, kind: input, shape index: {}]
  %s1 = inlined_call_operand.vmem [shape: f32[2], index: 1, kind: input, shape index: {}]
  %s2 = inlined_call_operand.vmem [shape: f32[2,8,32], index: 2, kind: input, shape index: {}]
  %s3 = inlined_call_operand.vmem [shape: f32[2,1,8], index: 3, kind: input, shape index: {}]
  %s4 = inlined_call_operand.vmem [shape: f32[2,4,32,8], index: 4, kind: input, shape index: {}]
  %s5 = inlined_call_operand.vmem [shape: f32[2,4,32,8], index: 5, kind: input, shape index: {}]
  %s6 = inlined_call_operand.vmem [shape: f32[2,4,32,8], index: 6, kind: input, shape index: {}]
  %s7 = inlined_call_operand.vmem [shape: f32[2,4,8,32], index: 7, kind: input, shape index: {}]
  %s8 = inlined_call_operand.vmem [shape: f32[2,32,64], index: 8, kind: input, shape index: {}]
  %s9 = inlined_call_operand.vmem [shape: f32[2,1,64], index: 9, kind: input, shape index: {}]
  %s10 = inlined_call_operand.vmem [shape: f32[2,64,32], index: 10, kind: input, shape index: {}]
  %s11 = inlined_call_operand.vmem [shape: f32[2,1,32], index: 11, kind: input, shape index: {}]
  %s12 = inlined_call_operand.hbm [shape: f32[2,8,32], index: 12, kind: output, shape index: {}]
  %s13 = sld [smem:[#allocation0]]
  $region97: #{tpu_custom_call.1} parent=0
    _
  %s15 = ssub.s32 1, %s13
  %s16 = scalar_select 0, %s15, %s13
  $region1: #{tpu_custom_call.1} parent=0
    #allocation3 [shape = 'u8[1024]{0}', space=smem, size = 0x400, scoped, tag = 'input window, operand 0, single buffered']
    #allocation4 [shape = 's32[2]{0}', space=sflag, size = 0x8, scoped, tag = 'scoped memory for tpu_custom_call.1']
    #allocation5 [shape = 's32[2]{0}', space=sflag, size = 0x8, scoped, tag = 'scoped memory for tpu_custom_call.1']
    #allocation6 [shape = 'u8[512]{0}', space=smem, size = 0x200, scoped, tag = 'input window, operand 1, single buffered']
    #allocation7 [shape = 's32[1]{0}', space=sflag, size = 0x4, scoped, tag = 'scoped memory for tpu_custom_call.1']
    #allocation8 [shape = 'u8[8192]{0}', space=vmem, size = 0x2000, scoped, tag = 'output window, operand 0, single buffered']
    %17 = vsyncpa [#allocation5], 0
    %18 = vsyncpa [#allocation7], 0
    %19 = vsyncpa [#allocation4], 0
    loop: start=0, step=1, limit=4
    $region2: #{tpu_custom_call.1} parent=1 // loop_pre_header
      _
    $region3: #{tpu_custom_call.1} parent=1 // loop_header
      %s21 = sphi 0, %s25
      %p22 = scmp.ge.s32.totalorder %s21, 4
      %s28 = sphi 0, %s40
      %s29 = sphi 0, %s36
      %s30 = sphi 0, %s28
      %s31 = sphi 0, %s29
      %s32 = sphi 0, %s30
      %s33 = sphi 0, %s31
      %s41 = sphi 0, %s41
      %s43 = sphi 0, %s41
      %s44 = sphi 0, %s43
      %s58 = sphi 0, %s44
      %s62 = sphi 0, %s62
      %s64 = sphi 0, %s62
      %s65 = sphi 0, %s64
      %s79 = sphi 0, %s65
      %s85 = sphi 0, %s87
      %s88 = sphi 0, %s85
      %s89 = sphi 0, %s88
      %s105 = sphi 0, %s89
      %s111 = sphi 0, %s113
      %s114 = sphi 0, %s111
      %s115 = sphi 0, %s114
      %s131 = sphi 0, %s115
      %s137 = sphi 0, %s139
      %s140 = sphi 0, %s137
      %s141 = sphi 0, %s140
      %s157 = sphi 0, %s141
      %s163 = sphi 0, %s165
      %s166 = sphi 0, %s163
      %s167 = sphi 0, %s166
      %s183 = sphi 0, %s167
      %s189 = sphi 0, %s191
      %s192 = sphi 0, %s189
      %s193 = sphi 0, %s192
      %s209 = sphi 0, %s193
      %s215 = sphi 0, %s217
      %s218 = sphi 0, %s215
      %s219 = sphi 0, %s218
      %s235 = sphi 0, %s219
      %s241 = sphi 0, %s243
      %s244 = sphi 0, %s241
      %s245 = sphi 0, %s244
      %s261 = sphi 0, %s245
      %s267 = sphi 0, %s269
      %s270 = sphi 0, %s267
      %s271 = sphi 0, %s270
      %s287 = sphi 0, %s271
      %s293 = sphi 0, %s295
      %s296 = sphi 0, %s293
      %s297 = sphi 0, %s296
      %s313 = sphi 0, %s297
      %s319 = sphi 0, %s321
      %s322 = sphi 0, %s319
      %s323 = sphi 0, %s322
      %s339 = sphi 0, %s323
      %s345 = sphi 0, %s347
      %s348 = sphi 0, %s345
      %s349 = sphi 0, %s348
      %s365 = sphi 0, %s349
    $region4: #{tpu_custom_call.1} parent=1 // loop_header_branch
      %24 = sbr.rel (%p22) target = $region8
    $region5: #{tpu_custom_call.1} parent=1 // loop_body
      %s26 = ssub.s32 %s21, 1
      %s27 = ssub.s32 %s21, 2
      %s34 = sadd.s32 1, %s29
      %p35 = scmp.ge.s32.totalorder %s34, 2
      %s36 = scalar_select %p35, 0, %s34
      %s37 = sadd.s32 1, %s28
      %s38 = scalar_select %p35, %s37, %s28
      %p39 = scmp.ge.s32.totalorder %s38, 1
      %s40 = scalar_select %p39, 0, %s38
      %s42 = sadd.s32 %s41, 1
      %p45 = scmp.eq.s32.totalorder %s21, 1
      %p46 = scmp.ne.s32.totalorder %s41, %s43
      %p47 = scmp.eq.s32.totalorder %s21, 0
      %p48 = por %p46, %p47
      %p49 = scmp.ne.s32.totalorder %s41, %s43
      %p50 = scmp.eq.s32.totalorder %s26, 1
      %p51 = por %p49, %p50
      %p52 = scmp.ne.s32.totalorder %s43, %s44
      %p53 = scmp.eq.s32.totalorder %s26, 0
      %p54 = por %p52, %p53
      %p55 = scmp.ne.s32.totalorder %s43, %s44
      %p56 = scmp.eq.s32.totalorder %s27, 1
      %p57 = por %p55, %p56
      %p59 = scmp.ne.s32.totalorder %s44, %s58
      %p60 = scmp.eq.s32.totalorder %s27, 0
      %p61 = por %p59, %p60
      %s63 = sadd.s32 %s62, 1
      %p66 = scmp.eq.s32.totalorder %s21, 1
      %p67 = scmp.ne.s32.totalorder %s62, %s64
      %p68 = scmp.eq.s32.totalorder %s21, 0
      %p69 = por %p67, %p68
      %p70 = scmp.ne.s32.totalorder %s62, %s64
      %p71 = scmp.eq.s32.totalorder %s26, 1
      %p72 = por %p70, %p71
      %p73 = scmp.ne.s32.totalorder %s64, %s65
      %p74 = scmp.eq.s32.totalorder %s26, 0
      %p75 = por %p73, %p74
      %p76 = scmp.ne.s32.totalorder %s64, %s65
      %p77 = scmp.eq.s32.totalorder %s27, 1
      %p78 = por %p76, %p77
      %p80 = scmp.ne.s32.totalorder %s65, %s79
      %p81 = scmp.eq.s32.totalorder %s27, 0
      %p82 = por %p80, %p81
      %s83 = ssub.s32 %s28, %s40
      %p84 = scmp.eq.s32.totalorder %s83, 0
      %s86 = sadd.s32 %s85, 1
      %s87 = scalar_select %p84, %s85, %s86
      %p90 = pneg %p84
      %p91 = scmp.eq.s32.totalorder %s21, 1
      %p92 = por %p90, %p91
      %p93 = scmp.ne.s32.totalorder %s85, %s88
      %p94 = scmp.eq.s32.totalorder %s21, 0
      %p95 = por %p93, %p94
      %p96 = scmp.ne.s32.totalorder %s85, %s88
      %p97 = scmp.eq.s32.totalorder %s26, 1
      %p98 = por %p96, %p97
      %p99 = scmp.ne.s32.totalorder %s88, %s89
      %p100 = scmp.eq.s32.totalorder %s26, 0
      %p101 = por %p99, %p100
      %p102 = scmp.ne.s32.totalorder %s88, %s89
      %p103 = scmp.eq.s32.totalorder %s27, 1
      %p104 = por %p102, %p103
      %p106 = scmp.ne.s32.totalorder %s89, %s105
      %p107 = scmp.eq.s32.totalorder %s27, 0
      %p108 = por %p106, %p107
      %s109 = ssub.s32 %s28, %s40
      %p110 = scmp.eq.s32.totalorder %s109, 0
      %s112 = sadd.s32 %s111, 1
      %s113 = scalar_select %p110, %s111, %s112
      %p116 = pneg %p110
      %p117 = scmp.eq.s32.totalorder %s21, 1
      %p118 = por %p116, %p117
      %p119 = scmp.ne.s32.totalorder %s111, %s114
      %p120 = scmp.eq.s32.totalorder %s21, 0
      %p121 = por %p119, %p120
      %p122 = scmp.ne.s32.totalorder %s111, %s114
      %p123 = scmp.eq.s32.totalorder %s26, 1
      %p124 = por %p122, %p123
      %p125 = scmp.ne.s32.totalorder %s114, %s115
      %p126 = scmp.eq.s32.totalorder %s26, 0
      %p127 = por %p125, %p126
      %p128 = scmp.ne.s32.totalorder %s114, %s115
      %p129 = scmp.eq.s32.totalorder %s27, 1
      %p130 = por %p128, %p129
      %p132 = scmp.ne.s32.totalorder %s115, %s131
      %p133 = scmp.eq.s32.totalorder %s27, 0
      %p134 = por %p132, %p133
      %s135 = ssub.s32 %s29, %s36
      %p136 = scmp.eq.s32.totalorder %s135, 0
      %s138 = sadd.s32 %s137, 1
      %s139 = scalar_select %p136, %s137, %s138
      %p142 = pneg %p136
      %p143 = scmp.eq.s32.totalorder %s21, 1
      %p144 = por %p142, %p143
      %p145 = scmp.ne.s32.totalorder %s137, %s140
      %p146 = scmp.eq.s32.totalorder %s21, 0
      %p147 = por %p145, %p146
      %p148 = scmp.ne.s32.totalorder %s137, %s140
      %p149 = scmp.eq.s32.totalorder %s26, 1
      %p150 = por %p148, %p149
      %p151 = scmp.ne.s32.totalorder %s140, %s141
      %p152 = scmp.eq.s32.totalorder %s26, 0
      %p153 = por %p151, %p152
      %p154 = scmp.ne.s32.totalorder %s140, %s141
      %p155 = scmp.eq.s32.totalorder %s27, 1
      %p156 = por %p154, %p155
      %p158 = scmp.ne.s32.totalorder %s141, %s157
      %p159 = scmp.eq.s32.totalorder %s27, 0
      %p160 = por %p158, %p159
      %s161 = ssub.s32 %s29, %s36
      %p162 = scmp.eq.s32.totalorder %s161, 0
      %s164 = sadd.s32 %s163, 1
      %s165 = scalar_select %p162, %s163, %s164
      %p168 = pneg %p162
      %p169 = scmp.eq.s32.totalorder %s21, 1
      %p170 = por %p168, %p169
      %p171 = scmp.ne.s32.totalorder %s163, %s166
      %p172 = scmp.eq.s32.totalorder %s21, 0
      %p173 = por %p171, %p172
      %p174 = scmp.ne.s32.totalorder %s163, %s166
      %p175 = scmp.eq.s32.totalorder %s26, 1
      %p176 = por %p174, %p175
      %p177 = scmp.ne.s32.totalorder %s166, %s167
      %p178 = scmp.eq.s32.totalorder %s26, 0
      %p179 = por %p177, %p178
      %p180 = scmp.ne.s32.totalorder %s166, %s167
      %p181 = scmp.eq.s32.totalorder %s27, 1
      %p182 = por %p180, %p181
      %p184 = scmp.ne.s32.totalorder %s167, %s183
      %p185 = scmp.eq.s32.totalorder %s27, 0
      %p186 = por %p184, %p185
      %s187 = ssub.s32 %s29, %s36
      %p188 = scmp.eq.s32.totalorder %s187, 0
      %s190 = sadd.s32 %s189, 1
      %s191 = scalar_select %p188, %s189, %s190
      %p194 = pneg %p188
      %p195 = scmp.eq.s32.totalorder %s21, 1
      %p196 = por %p194, %p195
      %p197 = scmp.ne.s32.totalorder %s189, %s192
      %p198 = scmp.eq.s32.totalorder %s21, 0
      %p199 = por %p197, %p198
      %p200 = scmp.ne.s32.totalorder %s189, %s192
      %p201 = scmp.eq.s32.totalorder %s26, 1
      %p202 = por %p200, %p201
      %p203 = scmp.ne.s32.totalorder %s192, %s193
      %p204 = scmp.eq.s32.totalorder %s26, 0
      %p205 = por %p203, %p204
      %p206 = scmp.ne.s32.totalorder %s192, %s193
      %p207 = scmp.eq.s32.totalorder %s27, 1
      %p208 = por %p206, %p207
      %p210 = scmp.ne.s32.totalorder %s193, %s209
      %p211 = scmp.eq.s32.totalorder %s27, 0
      %p212 = por %p210, %p211
      %s213 = ssub.s32 %s29, %s36
      %p214 = scmp.eq.s32.totalorder %s213, 0
      %s216 = sadd.s32 %s215, 1
      %s217 = scalar_select %p214, %s215, %s216
      %p220 = pneg %p214
      %p221 = scmp.eq.s32.totalorder %s21, 1
      %p222 = por %p220, %p221
      %p223 = scmp.ne.s32.totalorder %s215, %s218
      %p224 = scmp.eq.s32.totalorder %s21, 0
      %p225 = por %p223, %p224
      %p226 = scmp.ne.s32.totalorder %s215, %s218
      %p227 = scmp.eq.s32.totalorder %s26, 1
      %p228 = por %p226, %p227
      %p229 = scmp.ne.s32.totalorder %s218, %s219
      %p230 = scmp.eq.s32.totalorder %s26, 0
      %p231 = por %p229, %p230
      %p232 = scmp.ne.s32.totalorder %s218, %s219
      %p233 = scmp.eq.s32.totalorder %s27, 1
      %p234 = por %p232, %p233
      %p236 = scmp.ne.s32.totalorder %s219, %s235
      %p237 = scmp.eq.s32.totalorder %s27, 0
      %p238 = por %p236, %p237
      %s239 = ssub.s32 %s29, %s36
      %p240 = scmp.eq.s32.totalorder %s239, 0
      %s242 = sadd.s32 %s241, 1
      %s243 = scalar_select %p240, %s241, %s242
      %p246 = pneg %p240
      %p247 = scmp.eq.s32.totalorder %s21, 1
      %p248 = por %p246, %p247
      %p249 = scmp.ne.s32.totalorder %s241, %s244
      %p250 = scmp.eq.s32.totalorder %s21, 0
      %p251 = por %p249, %p250
      %p252 = scmp.ne.s32.totalorder %s241, %s244
      %p253 = scmp.eq.s32.totalorder %s26, 1
      %p254 = por %p252, %p253
      %p255 = scmp.ne.s32.totalorder %s244, %s245
      %p256 = scmp.eq.s32.totalorder %s26, 0
      %p257 = por %p255, %p256
      %p258 = scmp.ne.s32.totalorder %s244, %s245
      %p259 = scmp.eq.s32.totalorder %s27, 1
      %p260 = por %p258, %p259
      %p262 = scmp.ne.s32.totalorder %s245, %s261
      %p263 = scmp.eq.s32.totalorder %s27, 0
      %p264 = por %p262, %p263
      %s265 = ssub.s32 %s29, %s36
      %p266 = scmp.eq.s32.totalorder %s265, 0
      %s268 = sadd.s32 %s267, 1
      %s269 = scalar_select %p266, %s267, %s268
      %p272 = pneg %p266
      %p273 = scmp.eq.s32.totalorder %s21, 1
      %p274 = por %p272, %p273
      %p275 = scmp.ne.s32.totalorder %s267, %s270
      %p276 = scmp.eq.s32.totalorder %s21, 0
      %p277 = por %p275, %p276
      %p278 = scmp.ne.s32.totalorder %s267, %s270
      %p279 = scmp.eq.s32.totalorder %s26, 1
      %p280 = por %p278, %p279
      %p281 = scmp.ne.s32.totalorder %s270, %s271
      %p282 = scmp.eq.s32.totalorder %s26, 0
      %p283 = por %p281, %p282
      %p284 = scmp.ne.s32.totalorder %s270, %s271
      %p285 = scmp.eq.s32.totalorder %s27, 1
      %p286 = por %p284, %p285
      %p288 = scmp.ne.s32.totalorder %s271, %s287
      %p289 = scmp.eq.s32.totalorder %s27, 0
      %p290 = por %p288, %p289
      %s291 = ssub.s32 %s29, %s36
      %p292 = scmp.eq.s32.totalorder %s291, 0
      %s294 = sadd.s32 %s293, 1
      %s295 = scalar_select %p292, %s293, %s294
      %p298 = pneg %p292
      %p299 = scmp.eq.s32.totalorder %s21, 1
      %p300 = por %p298, %p299
      %p301 = scmp.ne.s32.totalorder %s293, %s296
      %p302 = scmp.eq.s32.totalorder %s21, 0
      %p303 = por %p301, %p302
      %p304 = scmp.ne.s32.totalorder %s293, %s296
      %p305 = scmp.eq.s32.totalorder %s26, 1
      %p306 = por %p304, %p305
      %p307 = scmp.ne.s32.totalorder %s296, %s297
      %p308 = scmp.eq.s32.totalorder %s26, 0
      %p309 = por %p307, %p308
      %p310 = scmp.ne.s32.totalorder %s296, %s297
      %p311 = scmp.eq.s32.totalorder %s27, 1
      %p312 = por %p310, %p311
      %p314 = scmp.ne.s32.totalorder %s297, %s313
      %p315 = scmp.eq.s32.totalorder %s27, 0
      %p316 = por %p314, %p315
      %s317 = ssub.s32 %s29, %s36
      %p318 = scmp.eq.s32.totalorder %s317, 0
      %s320 = sadd.s32 %s319, 1
      %s321 = scalar_select %p318, %s319, %s320
      %p324 = pneg %p318
      %p325 = scmp.eq.s32.totalorder %s21, 1
      %p326 = por %p324, %p325
      %p327 = scmp.ne.s32.totalorder %s319, %s322
      %p328 = scmp.eq.s32.totalorder %s21, 0
      %p329 = por %p327, %p328
      %p330 = scmp.ne.s32.totalorder %s319, %s322
      %p331 = scmp.eq.s32.totalorder %s26, 1
      %p332 = por %p330, %p331
      %p333 = scmp.ne.s32.totalorder %s322, %s323
      %p334 = scmp.eq.s32.totalorder %s26, 0
      %p335 = por %p333, %p334
      %p336 = scmp.ne.s32.totalorder %s322, %s323
      %p337 = scmp.eq.s32.totalorder %s27, 1
      %p338 = por %p336, %p337
      %p340 = scmp.ne.s32.totalorder %s323, %s339
      %p341 = scmp.eq.s32.totalorder %s27, 0
      %p342 = por %p340, %p341
      %s343 = ssub.s32 %s28, %s40
      %p344 = scmp.eq.s32.totalorder %s343, 0
      %s346 = sadd.s32 %s345, 1
      %s347 = scalar_select %p344, %s345, %s346
      %p350 = pneg %p344
      %p351 = scmp.eq.s32.totalorder %s21, 1
      %p352 = por %p350, %p351
      %p353 = scmp.ne.s32.totalorder %s345, %s348
      %p354 = scmp.eq.s32.totalorder %s21, 0
      %p355 = por %p353, %p354
      %p356 = scmp.ne.s32.totalorder %s345, %s348
      %p357 = scmp.eq.s32.totalorder %s26, 1
      %p358 = por %p356, %p357
      %p359 = scmp.ne.s32.totalorder %s348, %s349
      %p360 = scmp.eq.s32.totalorder %s26, 0
      %p361 = por %p359, %p360
      %p362 = scmp.ne.s32.totalorder %s348, %s349
      %p363 = scmp.eq.s32.totalorder %s27, 1
      %p364 = por %p362, %p363
      %p366 = scmp.ne.s32.totalorder %s349, %s365
      %p367 = scmp.eq.s32.totalorder %s27, 0
      %p368 = por %p366, %p367
      %p369 = scmp.le.s32.totalorder 1, %s21
      %p370 = scmp.lt.s32.totalorder %s21, 3
      %p371 = pnand %p369, %p370
      %p372 = pneg %p371
      // Predicated region
      $region9: #{tpu_custom_call.1} parent=5 // pred_check
        _
      $region10: #{tpu_custom_call.1} parent=5 // pred_check_branch
        %374 = sbr.rel (%p371) target = $region12
      $region11: #{tpu_custom_call.1} parent=5 // pred_region
        %s375 = ssub.s32 %s21, 1
        // Predicated region
        $region13: #{tpu_custom_call.1} parent=11 // pred_check
          %p376 = pneg %p54
        $region14: #{tpu_custom_call.1} parent=11 // pred_check_branch
          %378 = sbr.rel (%p376) target = $region16
        $region15: #{tpu_custom_call.1} parent=11 // pred_region
          %380 = vsyncadd [#allocation5], 0
          %s382 = sshll.u32 %s0, 4
          %s383 = int_to_ptr.vmem [resolvable:$true] %s382
          %385 = dma.vmem_to_smem %s383, 32, [#allocation3], [#allocation5]
        $region16: #{tpu_custom_call.1} parent=11 // pred_fallthru
          _
        // Predicated region
        $region17: #{tpu_custom_call.1} parent=11 // pred_check
          %p386 = pneg %p75
        $region18: #{tpu_custom_call.1} parent=11 // pred_check_branch
          %388 = sbr.rel (%p386) target = $region20
        $region19: #{tpu_custom_call.1} parent=11 // pred_region
          %390 = vsyncadd [#allocation7], 0
          %s392 = sshll.u32 %s1, 4
          %s393 = int_to_ptr.vmem [resolvable:$true] %s392
          %395 = dma.vmem_to_smem %s393, 16, [#allocation6], [#allocation7]
        $region20: #{tpu_custom_call.1} parent=11 // pred_fallthru
          _
        // Predicated region
        $region21: #{tpu_custom_call.1} parent=11 // pred_check
          %p396 = pneg %p101
        $region22: #{tpu_custom_call.1} parent=11 // pred_check_branch
          %398 = sbr.rel (%p396) target = $region24
        $region23: #{tpu_custom_call.1} parent=11 // pred_region
          %s399 = smul.u32 2, %s30
          %p400 = scmp.lt.s32.totalorder %s399, 1
          %s401 = scalar_select %p400, %s399, 1
          %s402 = smul.addr %s401, 8
          %s403 = scalar_lea.vmem %s2, %s402
          %s404 = smul.u32 2, %s30
        $region24: #{tpu_custom_call.1} parent=11 // pred_fallthru
          _
        // Predicated region
        $region25: #{tpu_custom_call.1} parent=11 // pred_check
          %p405 = pneg %p127
        $region26: #{tpu_custom_call.1} parent=11 // pred_check_branch
          %407 = sbr.rel (%p405) target = $region28
        $region27: #{tpu_custom_call.1} parent=11 // pred_region
          %s408 = smul.u32 2, %s30
          %p409 = scmp.lt.s32.totalorder %s408, 1
          %s410 = scalar_select %p409, %s408, 1
          %s411 = scalar_lea.vmem %s3, %s410
          %s412 = smul.u32 2, %s30
        $region28: #{tpu_custom_call.1} parent=11 // pred_fallthru
          _
      $region12: #{tpu_custom_call.1} parent=5 // pred_fallthru
        _
      %p413 = scmp.lt.s32.totalorder %s21, 2
      // Predicated region
      $region29: #{tpu_custom_call.1} parent=5 // pred_check
        %p414 = pneg %p413
      $region30: #{tpu_custom_call.1} parent=5 // pred_check_branch
        %416 = sbr.rel (%p414) target = $region32
      $region31: #{tpu_custom_call.1} parent=5 // pred_region
        // Predicated region
        $region33: #{tpu_custom_call.1} parent=31 // pred_check
          %p417 = pneg %p147
        $region34: #{tpu_custom_call.1} parent=31 // pred_check_branch
          %419 = sbr.rel (%p417) target = $region36
        $region35: #{tpu_custom_call.1} parent=31 // pred_region
          %p420 = scmp.lt.s32.totalorder %s29, 1
          %s421 = scalar_select %p420, %s29, 1
          %s422 = smul.addr %s421, 16
          %s423 = smul.addr %s422, 8
          %s424 = scalar_lea.vmem %s4, %s423
        $region36: #{tpu_custom_call.1} parent=31 // pred_fallthru
          _
        // Predicated region
        $region37: #{tpu_custom_call.1} parent=31 // pred_check
          %p425 = pneg %p173
        $region38: #{tpu_custom_call.1} parent=31 // pred_check_branch
          %427 = sbr.rel (%p425) target = $region40
        $region39: #{tpu_custom_call.1} parent=31 // pred_region
          %p428 = scmp.lt.s32.totalorder %s29, 1
          %s429 = scalar_select %p428, %s29, 1
          %s430 = smul.addr %s429, 16
          %s431 = smul.addr %s430, 8
          %s432 = scalar_lea.vmem %s5, %s431
        $region40: #{tpu_custom_call.1} parent=31 // pred_fallthru
          _
        // Predicated region
        $region41: #{tpu_custom_call.1} parent=31 // pred_check
          %p433 = pneg %p199
        $region42: #{tpu_custom_call.1} parent=31 // pred_check_branch
          %435 = sbr.rel (%p433) target = $region44
        $region43: #{tpu_custom_call.1} parent=31 // pred_region
          %p436 = scmp.lt.s32.totalorder %s29, 1
          %s437 = scalar_select %p436, %s29, 1
          %s438 = smul.addr %s437, 16
          %s439 = smul.addr %s438, 8
          %s440 = scalar_lea.vmem %s6, %s439
        $region44: #{tpu_custom_call.1} parent=31 // pred_fallthru
          _
        // Predicated region
        $region45: #{tpu_custom_call.1} parent=31 // pred_check
          %p441 = pneg %p225
        $region46: #{tpu_custom_call.1} parent=31 // pred_check_branch
          %443 = sbr.rel (%p441) target = $region48
        $region47: #{tpu_custom_call.1} parent=31 // pred_region
          %p444 = scmp.lt.s32.totalorder %s29, 1
          %s445 = scalar_select %p444, %s29, 1
          %s446 = smul.addr %s445, 4
          %s447 = smul.addr %s446, 8
          %s448 = scalar_lea.vmem %s7, %s447
        $region48: #{tpu_custom_call.1} parent=31 // pred_fallthru
          _
        // Predicated region
        $region49: #{tpu_custom_call.1} parent=31 // pred_check
          %p449 = pneg %p251
        $region50: #{tpu_custom_call.1} parent=31 // pred_check_branch
          %451 = sbr.rel (%p449) target = $region52
        $region51: #{tpu_custom_call.1} parent=31 // pred_region
          %p452 = scmp.lt.s32.totalorder %s29, 1
          %s453 = scalar_select %p452, %s29, 1
          %s454 = smul.addr %s453, 4
          %s455 = smul.addr %s454, 8
          %s456 = scalar_lea.vmem %s8, %s455
        $region52: #{tpu_custom_call.1} parent=31 // pred_fallthru
          _
        // Predicated region
        $region53: #{tpu_custom_call.1} parent=31 // pred_check
          %p457 = pneg %p277
        $region54: #{tpu_custom_call.1} parent=31 // pred_check_branch
          %459 = sbr.rel (%p457) target = $region56
        $region55: #{tpu_custom_call.1} parent=31 // pred_region
          %p460 = scmp.lt.s32.totalorder %s29, 1
          %s461 = scalar_select %p460, %s29, 1
          %s462 = scalar_lea.vmem %s9, %s461
        $region56: #{tpu_custom_call.1} parent=31 // pred_fallthru
          _
        // Predicated region
        $region57: #{tpu_custom_call.1} parent=31 // pred_check
          %p463 = pneg %p303
        $region58: #{tpu_custom_call.1} parent=31 // pred_check_branch
          %465 = sbr.rel (%p463) target = $region60
        $region59: #{tpu_custom_call.1} parent=31 // pred_region
          %p466 = scmp.lt.s32.totalorder %s29, 1
          %s467 = scalar_select %p466, %s29, 1
          %s468 = smul.addr %s467, 8
          %s469 = smul.addr %s468, 8
          %s470 = scalar_lea.vmem %s10, %s469
        $region60: #{tpu_custom_call.1} parent=31 // pred_fallthru
          _
        // Predicated region
        $region61: #{tpu_custom_call.1} parent=31 // pred_check
          %p471 = pneg %p329
        $region62: #{tpu_custom_call.1} parent=31 // pred_check_branch
          %473 = sbr.rel (%p471) target = $region64
        $region63: #{tpu_custom_call.1} parent=31 // pred_region
          %p474 = scmp.lt.s32.totalorder %s29, 1
          %s475 = scalar_select %p474, %s29, 1
          %s476 = scalar_lea.vmem %s11, %s475
        $region64: #{tpu_custom_call.1} parent=31 // pred_fallthru
          _
      $region32: #{tpu_custom_call.1} parent=5 // pred_fallthru
        _
      %p477 = scmp.le.s32.totalorder 1, %s21
      %p478 = scmp.lt.s32.totalorder %s21, 3
      %p479 = pnand %p477, %p478
      %p480 = pneg %p479
      // Predicated region
      $region65: #{tpu_custom_call.1} parent=5 // pred_check
        _
      $region66: #{tpu_custom_call.1} parent=5 // pred_check_branch
        %482 = sbr.rel (%p479) target = $region68
      $region67: #{tpu_custom_call.1} parent=5 // pred_region
        %s483 = ssub.s32 %s21, 1
        // Predicated region
        $region69: #{tpu_custom_call.1} parent=67 // pred_check
          %p484 = pneg %p54
        $region70: #{tpu_custom_call.1} parent=67 // pred_check_branch
          %486 = sbr.rel (%p484) target = $region72
        $region71: #{tpu_custom_call.1} parent=67 // pred_region
          %488 = dma.done [#allocation5], 32
        $region72: #{tpu_custom_call.1} parent=67 // pred_fallthru
          _
        // Predicated region
        $region73: #{tpu_custom_call.1} parent=67 // pred_check
          %p489 = pneg %p75
        $region74: #{tpu_custom_call.1} parent=67 // pred_check_branch
          %491 = sbr.rel (%p489) target = $region76
        $region75: #{tpu_custom_call.1} parent=67 // pred_region
          %493 = dma.done [#allocation7], 16
        $region76: #{tpu_custom_call.1} parent=67 // pred_fallthru
          _
        %494 = sfence
        %p495 = pneg %p54
        %p496 = pneg %p51
        %p497 = pneg %p75
        %p498 = pneg %p72
        %s499 = smul.u32 2, %s30
        %p500 = scmp.lt.s32.totalorder %s499, 1
        %s501 = scalar_select %p500, %s499, 1
        %s502 = smul.addr %s501, 8
        %s503 = scalar_lea.vmem %s2, %s502
        %p504 = pneg %p101
        %p505 = pneg %p98
        %s506 = smul.u32 2, %s30
        %p507 = scmp.lt.s32.totalorder %s506, 1
        %s508 = scalar_select %p507, %s506, 1
        %s509 = scalar_lea.vmem %s3, %s508
        %p510 = pneg %p127
        %p511 = pneg %p124
        %p512 = scmp.lt.s32.totalorder %s31, 1
        %s513 = scalar_select %p512, %s31, 1
        %s514 = smul.addr %s513, 16
        %s515 = smul.addr %s514, 8
        %s516 = scalar_lea.vmem %s4, %s515
        %p517 = pneg %p153
        %p518 = pneg %p150
        %p519 = scmp.lt.s32.totalorder %s31, 1
        %s520 = scalar_select %p519, %s31, 1
        %s521 = smul.addr %s520, 16
        %s522 = smul.addr %s521, 8
        %s523 = scalar_lea.vmem %s5, %s522
        %p524 = pneg %p179
        %p525 = pneg %p176
        %p526 = scmp.lt.s32.totalorder %s31, 1
        %s527 = scalar_select %p526, %s31, 1
        %s528 = smul.addr %s527, 16
        %s529 = smul.addr %s528, 8
        %s530 = scalar_lea.vmem %s6, %s529
        %p531 = pneg %p205
        %p532 = pneg %p202
        %p533 = scmp.lt.s32.totalorder %s31, 1
        %s534 = scalar_select %p533, %s31, 1
        %s535 = smul.addr %s534, 4
        %s536 = smul.addr %s535, 8
        %s537 = scalar_lea.vmem %s7, %s536
        %p538 = pneg %p231
        %p539 = pneg %p228
        %p540 = scmp.lt.s32.totalorder %s31, 1
        %s541 = scalar_select %p540, %s31, 1
        %s542 = smul.addr %s541, 4
        %s543 = smul.addr %s542, 8
        %s544 = scalar_lea.vmem %s8, %s543
        %p545 = pneg %p257
        %p546 = pneg %p254
        %p547 = scmp.lt.s32.totalorder %s31, 1
        %s548 = scalar_select %p547, %s31, 1
        %s549 = scalar_lea.vmem %s9, %s548
        %p550 = pneg %p283
        %p551 = pneg %p280
        %p552 = scmp.lt.s32.totalorder %s31, 1
        %s553 = scalar_select %p552, %s31, 1
        %s554 = smul.addr %s553, 8
        %s555 = smul.addr %s554, 8
        %s556 = scalar_lea.vmem %s10, %s555
        %p557 = pneg %p309
        %p558 = pneg %p306
        %p559 = scmp.lt.s32.totalorder %s31, 1
        %s560 = scalar_select %p559, %s31, 1
        %s561 = scalar_lea.vmem %s11, %s560
        %p562 = pneg %p335
        %p563 = pneg %p332
        %p564 = pneg %p361
        %p565 = pneg %p358
        %s566 = smul.u32 2, %s30
        %p567 = scmp.lt.s32.totalorder %s566, 1
        %s568 = scalar_select %p567, %s566, 1
        %s569 = smul.addr %s568, 8
        %s570 = scalar_lea.vmem %s2, %s569
        %s571 = smul.u32 2, %s30
        %s572 = smul.u32 2, %s30
        %p573 = scmp.lt.s32.totalorder %s572, 1
        %s574 = scalar_select %p573, %s572, 1
        %s575 = scalar_lea.vmem %s3, %s574
        %s576 = smul.u32 2, %s30
        %p577 = scmp.lt.s32.totalorder %s31, 1
        %s578 = scalar_select %p577, %s31, 1
        %s579 = smul.addr %s578, 16
        %s580 = smul.addr %s579, 8
        %s581 = scalar_lea.vmem %s4, %s580
        %p582 = scmp.lt.s32.totalorder %s31, 1
        %s583 = scalar_select %p582, %s31, 1
        %s584 = smul.addr %s583, 16
        %s585 = smul.addr %s584, 8
        %s586 = scalar_lea.vmem %s5, %s585
        %p587 = scmp.lt.s32.totalorder %s31, 1
        %s588 = scalar_select %p587, %s31, 1
        %s589 = smul.addr %s588, 16
        %s590 = smul.addr %s589, 8
        %s591 = scalar_lea.vmem %s6, %s590
        %p592 = scmp.lt.s32.totalorder %s31, 1
        %s593 = scalar_select %p592, %s31, 1
        %s594 = smul.addr %s593, 4
        %s595 = smul.addr %s594, 8
        %s596 = scalar_lea.vmem %s7, %s595
        %p597 = scmp.lt.s32.totalorder %s31, 1
        %s598 = scalar_select %p597, %s31, 1
        %s599 = smul.addr %s598, 4
        %s600 = smul.addr %s599, 8
        %s601 = scalar_lea.vmem %s8, %s600
        %p602 = scmp.lt.s32.totalorder %s31, 1
        %s603 = scalar_select %p602, %s31, 1
        %s604 = scalar_lea.vmem %s9, %s603
        %p605 = scmp.lt.s32.totalorder %s31, 1
        %s606 = scalar_select %p605, %s31, 1
        %s607 = smul.addr %s606, 8
        %s608 = smul.addr %s607, 8
        %s609 = scalar_lea.vmem %s10, %s608
        %p610 = scmp.lt.s32.totalorder %s31, 1
        %s611 = scalar_select %p610, %s31, 1
        %s612 = scalar_lea.vmem %s11, %s611
        %s613 = smul.u32 2, %s30
        %p614 = scmp.eq.s32.totalorder %s31, 0
        // Predicated region
        $region77: #{tpu_custom_call.1} parent=67 // pred_check
          %p615 = pneg %p614
        $region78: #{tpu_custom_call.1} parent=67 // pred_check_branch
          %617 = sbr.rel (%p615) target = $region80
        $region79: #{tpu_custom_call.1} parent=67 // pred_region
          %v618 = vld [vmem:[%s570] sm:$0xff]
          %v619 = vld [vmem:[%s570 + $0x8] sm:$0xff]
          %vm620 = vcmask 261120
          %621 = vst.msk [vmem:[#allocation2] sm:$0xff] %vm620, %v618
          %622 = vst.msk [vmem:[#allocation2 + $0x8] sm:$0xff] %vm620, %v619
        $region80: #{tpu_custom_call.1} parent=67 // pred_fallthru
          _
        %v623 = vld [vmem:[#allocation2] sm:$0xff]
        %v624 = vld [vmem:[#allocation2 + $0x8] sm:$0xff]
        %s625 = smul.u32 %s31, 128
        %s626 = sld [smem:[#allocation3 + %s625]]
        %s627 = sadd.s32 %s625, 1
        %s628 = sld [smem:[#allocation3 + %s627]]
        %s629 = sadd.s32 %s625, 2
        %s630 = sld [smem:[#allocation3 + %s629]]
        %s631 = sadd.s32 %s625, 3
        %s632 = sld [smem:[#allocation3 + %s631]]
        %v633 = vld [vmem:[%s581] sm:$0xff]
        %v634 = vld [vmem:[%s581 + $0x8] sm:$0xff]
        %v635 = vld [vmem:[%s581 + $0x10] sm:$0xff]
        %v636 = vld [vmem:[%s581 + $0x18] sm:$0xff]
        %v637 = vld [vmem:[%s581 + $0x20] sm:$0xff]
        %v638 = vld [vmem:[%s581 + $0x28] sm:$0xff]
        %v639 = vld [vmem:[%s581 + $0x30] sm:$0xff]
        %v640 = vld [vmem:[%s581 + $0x38] sm:$0xff]
        %v641 = vld [vmem:[%s581 + $0x40] sm:$0xff]
        %v642 = vld [vmem:[%s581 + $0x48] sm:$0xff]
        %v643 = vld [vmem:[%s581 + $0x50] sm:$0xff]
        %v644 = vld [vmem:[%s581 + $0x58] sm:$0xff]
        %v645 = vld [vmem:[%s581 + $0x60] sm:$0xff]
        %v646 = vld [vmem:[%s581 + $0x68] sm:$0xff]
        %v647 = vld [vmem:[%s581 + $0x70] sm:$0xff]
        %v648 = vld [vmem:[%s581 + $0x78] sm:$0xff]
        %v649 = vld [vmem:[%s586] sm:$0xff]
        %v650 = vld [vmem:[%s586 + $0x8] sm:$0xff]
        %v651 = vld [vmem:[%s586 + $0x10] sm:$0xff]
        %v652 = vld [vmem:[%s586 + $0x18] sm:$0xff]
        %v653 = vld [vmem:[%s586 + $0x20] sm:$0xff]
        %v654 = vld [vmem:[%s586 + $0x28] sm:$0xff]
        %v655 = vld [vmem:[%s586 + $0x30] sm:$0xff]
        %v656 = vld [vmem:[%s586 + $0x38] sm:$0xff]
        %v657 = vld [vmem:[%s586 + $0x40] sm:$0xff]
        %v658 = vld [vmem:[%s586 + $0x48] sm:$0xff]
        %v659 = vld [vmem:[%s586 + $0x50] sm:$0xff]
        %v660 = vld [vmem:[%s586 + $0x58] sm:$0xff]
        %v661 = vld [vmem:[%s586 + $0x60] sm:$0xff]
        %v662 = vld [vmem:[%s586 + $0x68] sm:$0xff]
        %v663 = vld [vmem:[%s586 + $0x70] sm:$0xff]
        %v664 = vld [vmem:[%s586 + $0x78] sm:$0xff]
        %v665 = vld [vmem:[%s591] sm:$0xff]
        %v666 = vld [vmem:[%s591 + $0x8] sm:$0xff]
        %v667 = vld [vmem:[%s591 + $0x10] sm:$0xff]
        %v668 = vld [vmem:[%s591 + $0x18] sm:$0xff]
        %v669 = vld [vmem:[%s591 + $0x20] sm:$0xff]
        %v670 = vld [vmem:[%s591 + $0x28] sm:$0xff]
        %v671 = vld [vmem:[%s591 + $0x30] sm:$0xff]
        %v672 = vld [vmem:[%s591 + $0x38] sm:$0xff]
        %v673 = vld [vmem:[%s591 + $0x40] sm:$0xff]
        %v674 = vld [vmem:[%s591 + $0x48] sm:$0xff]
        %v675 = vld [vmem:[%s591 + $0x50] sm:$0xff]
        %v676 = vld [vmem:[%s591 + $0x58] sm:$0xff]
        %v677 = vld [vmem:[%s591 + $0x60] sm:$0xff]
        %v678 = vld [vmem:[%s591 + $0x68] sm:$0xff]
        %v679 = vld [vmem:[%s591 + $0x70] sm:$0xff]
        %v680 = vld [vmem:[%s591 + $0x78] sm:$0xff]
        %v681 = vld [vmem:[%s596] sm:$0xff]
        %v682 = vld [vmem:[%s596 + $0x8] sm:$0xff]
        %v683 = vld [vmem:[%s596 + $0x10] sm:$0xff]
        %v684 = vld [vmem:[%s596 + $0x18] sm:$0xff]
        %v685 = vld [vmem:[%s601] sm:$0xff]
        %v686 = vld [vmem:[%s601 + $0x8] sm:$0xff]
        %v687 = vld [vmem:[%s601 + $0x10] sm:$0xff]
        %v688 = vld [vmem:[%s601 + $0x18] sm:$0xff]
        %v689 = vld [vmem:[%s604] sm:$0x1]
        %v690 = vld [vmem:[%s609] sm:$0xff]
        %v691 = vld [vmem:[%s609 + $0x8] sm:$0xff]
        %v692 = vld [vmem:[%s609 + $0x10] sm:$0xff]
        %v693 = vld [vmem:[%s609 + $0x18] sm:$0xff]
        %v694 = vld [vmem:[%s609 + $0x20] sm:$0xff]
        %v695 = vld [vmem:[%s609 + $0x28] sm:$0xff]
        %v696 = vld [vmem:[%s609 + $0x30] sm:$0xff]
        %v697 = vld [vmem:[%s609 + $0x38] sm:$0xff]
        %v698 = vld [vmem:[%s612] sm:$0x1]
        %vm699 = vcmask 261120
        %v700 = vsel %vm699, %v623, 0.0
        %701 = vadd.xlane.f32.xlu0 %v700
        %v702 = vpop.xlane.xlu0 %701
        %v703 = vsel %vm699, %v624, 0.0
        %704 = vadd.xlane.f32.xlu0 %v703
        %v705 = vpop.xlane.xlu0 %704
        %v706 = vrcp.pop 32.0
        %v707 = vmul.f32 32.0, %v706
        %v708 = vsub.f32 1.0, %v707
        %v709 = vmul.f32 %v706, %v708
        %v710 = vadd.f32 %v706, %v709
        %vm711 = vweird.f32 %v706
        %v712 = vsel %vm711, %v706, %v710
        %v713 = vmul.f32 %v702, %v712
        %v714 = vmul.f32 %v705, %v712
        %v715 = vsub.f32 %v623, %v713
        %v716 = vsub.f32 %v624, %v714
        %v717 = vmul.f32 %v715, %v715
        %v718 = vmul.f32 %v716, %v716
        %v719 = vsel %vm699, %v717, 0.0
        %720 = vadd.xlane.f32.xlu0 %v719
        %v721 = vpop.xlane.xlu0 %720
        %v722 = vsel %vm699, %v718, 0.0
        %723 = vadd.xlane.f32.xlu0 %v722
        %v724 = vpop.xlane.xlu0 %723
        %v725 = vrcp.pop 31.0
        %v726 = vmul.f32 31.0, %v725
        %v727 = vsub.f32 1.0, %v726
        %v728 = vmul.f32 %v725, %v727
        %v729 = vadd.f32 %v725, %v728
        %vm730 = vweird.f32 %v725
        %v731 = vsel %vm730, %v725, %v729
        %v732 = vmul.f32 %v721, %v731
        %v733 = vmul.f32 %v724, %v731
        %v734 = vrsqrt.pop %v732
        %v735 = vmul.f32 %v734, %v732
        %v736 = vmul.f32 %v735, %v734
        %v737 = vmul.f32 0.5, %v736
        %v738 = vsub.f32 1.5, %v737
        %v739 = vmul.f32 %v734, %v738
        %v740 = vmul.f32 %v732, %v739
        %vm741 = vcmp.eq.f32.partialorder %v732, inf
        %v742 = vsel %vm741, %v732, %v740
        %vm743 = vcmp.eq.f32.partialorder %v732, 0.0
        %v744 = vand.u32 %v732, 2147483648
        %v745 = vsel %vm743, %v744, %v742
        %v746 = vrsqrt.pop %v733
        %v747 = vmul.f32 %v746, %v733
        %v748 = vmul.f32 %v747, %v746
        %v749 = vmul.f32 0.5, %v748
        %v750 = vsub.f32 1.5, %v749
        %v751 = vmul.f32 %v746, %v750
        %v752 = vmul.f32 %v733, %v751
        %vm753 = vcmp.eq.f32.partialorder %v733, inf
        %v754 = vsel %vm753, %v733, %v752
        %vm755 = vcmp.eq.f32.partialorder %v733, 0.0
        %v756 = vand.u32 %v733, 2147483648
        %v757 = vsel %vm755, %v756, %v754
        %v758 = vstv %s626
        %v759 = vmul.f32 %v758, %v715
        %v760 = vmul.f32 %v758, %v716
        %v761 = vadd.f32 %v745, 1e-06
        %v762 = vadd.f32 %v757, 1e-06
        %v763 = vrcp.pop %v761
        %v764 = vmul.f32 %v761, %v763
        %v765 = vsub.f32 1.0, %v764
        %v766 = vmul.f32 %v763, %v765
        %v767 = vadd.f32 %v763, %v766
        %vm768 = vweird.f32 %v761
        %vm769 = vweird.f32 %v763
        %vm770 = vmor %vm768, %vm769
        %v771 = vsel %vm770, %v763, %v767
        %v772 = vand.u32 2147483647, %v761
        %vm773 = vcmp.eq.f32.partialorder %v772, 8.507059e+37
        %v774 = vand.u32 %v761, 2147483648
        %v775 = vor.u32 1.1754944e-38, %v774
        %v776 = vsel %vm773, %v775, %v771
        %v777 = vmul.f32 %v759, %v776
        %v778 = vrcp.pop %v762
        %v779 = vmul.f32 %v762, %v778
        %v780 = vsub.f32 1.0, %v779
        %v781 = vmul.f32 %v778, %v780
        %v782 = vadd.f32 %v778, %v781
        %vm783 = vweird.f32 %v762
        %vm784 = vweird.f32 %v778
        %vm785 = vmor %vm783, %vm784
        %v786 = vsel %vm785, %v778, %v782
        %v787 = vand.u32 2147483647, %v762
        %vm788 = vcmp.eq.f32.partialorder %v787, 8.507059e+37
        %v789 = vand.u32 %v762, 2147483648
        %v790 = vor.u32 1.1754944e-38, %v789
        %v791 = vsel %vm788, %v790, %v786
        %v792 = vmul.f32 %v760, %v791
        %v793 = vstv %s628
        %v794 = vadd.f32 %v777, %v793
        %v795 = vadd.f32 %v792, %v793
        %v797 = vsel %vm699, %v794, 0
        %v800 = vsel %vm699, %v795, 0
        %802 = vmatpush.msra.mxu0 0.0
        %803 = vmatpush.msra.mxu0 0.0
        %804 = vmatpush.msra.mxu0 0.0
        %805 = vmatpush.msra.mxu0 0.0
        %806 = vmatpush.msra.mxu0 0.0
        %807 = vmatpush.msra.mxu0 0.0
        %808 = vmatpush.msra.mxu0 0.0
        %809 = vmatpush.msra.mxu0 0.0
        %810 = vmatpush.msra.mxu0 0.0
        %811 = vmatpush.msra.mxu0 0.0
        %812 = vmatpush.msra.mxu0 0.0
        %813 = vmatpush.msra.mxu0 0.0
        %814 = vmatpush.msra.mxu0 %v636
        %815 = vmatpush.msra.mxu0 %v635
        %816 = vmatpush.msra.mxu0 %v634
        %817 = vmatpush.msra.mxu0 %v633
        %818 = vmatmul.f32.gmra.mxu0 %v797
        %v819 = vpop.f32.mrf.mxu0
        %v820 = vadd.f32 0.0, %v819
        %821 = vmatmul.f32.gmra.mxu0 %v800
        %v822 = vpop.f32.mrf.mxu0
        %v823 = vadd.f32 0.0, %v822
        %824 = vdwg.mxu0
        %825 = vmatpush.msra.mxu0 0.0
        %826 = vmatpush.msra.mxu0 0.0
        %827 = vmatpush.msra.mxu0 0.0
        %828 = vmatpush.msra.mxu0 0.0
        %829 = vmatpush.msra.mxu0 0.0
        %830 = vmatpush.msra.mxu0 0.0
        %831 = vmatpush.msra.mxu0 0.0
        %832 = vmatpush.msra.mxu0 0.0
        %833 = vmatpush.msra.mxu0 0.0
        %834 = vmatpush.msra.mxu0 0.0
        %835 = vmatpush.msra.mxu0 0.0
        %836 = vmatpush.msra.mxu0 0.0
        %837 = vmatpush.msra.mxu0 %v640
        %838 = vmatpush.msra.mxu0 %v639
        %839 = vmatpush.msra.mxu0 %v638
        %840 = vmatpush.msra.mxu0 %v637
        %841 = vmatmul.f32.gmra.mxu0 %v797
        %v842 = vpop.f32.mrf.mxu0
        %v843 = vadd.f32 0.0, %v842
        %844 = vmatmul.f32.gmra.mxu0 %v800
        %v845 = vpop.f32.mrf.mxu0
        %v846 = vadd.f32 0.0, %v845
        %847 = vdwg.mxu0
        %848 = vmatpush.msra.mxu0 0.0
        %849 = vmatpush.msra.mxu0 0.0
        %850 = vmatpush.msra.mxu0 0.0
        %851 = vmatpush.msra.mxu0 0.0
        %852 = vmatpush.msra.mxu0 0.0
        %853 = vmatpush.msra.mxu0 0.0
        %854 = vmatpush.msra.mxu0 0.0
        %855 = vmatpush.msra.mxu0 0.0
        %856 = vmatpush.msra.mxu0 0.0
        %857 = vmatpush.msra.mxu0 0.0
        %858 = vmatpush.msra.mxu0 0.0
        %859 = vmatpush.msra.mxu0 0.0
        %860 = vmatpush.msra.mxu0 %v644
        %861 = vmatpush.msra.mxu0 %v643
        %862 = vmatpush.msra.mxu0 %v642
        %863 = vmatpush.msra.mxu0 %v641
        %864 = vmatmul.f32.gmra.mxu0 %v797
        %v865 = vpop.f32.mrf.mxu0
        %v866 = vadd.f32 0.0, %v865
        %867 = vmatmul.f32.gmra.mxu0 %v800
        %v868 = vpop.f32.mrf.mxu0
        %v869 = vadd.f32 0.0, %v868
        %870 = vdwg.mxu0
        %871 = vmatpush.msra.mxu0 0.0
        %872 = vmatpush.msra.mxu0 0.0
        %873 = vmatpush.msra.mxu0 0.0
        %874 = vmatpush.msra.mxu0 0.0
        %875 = vmatpush.msra.mxu0 0.0
        %876 = vmatpush.msra.mxu0 0.0
        %877 = vmatpush.msra.mxu0 0.0
        %878 = vmatpush.msra.mxu0 0.0
        %879 = vmatpush.msra.mxu0 0.0
        %880 = vmatpush.msra.mxu0 0.0
        %881 = vmatpush.msra.mxu0 0.0
        %882 = vmatpush.msra.mxu0 0.0
        %883 = vmatpush.msra.mxu0 %v648
        %884 = vmatpush.msra.mxu0 %v647
        %885 = vmatpush.msra.mxu0 %v646
        %886 = vmatpush.msra.mxu0 %v645
        %887 = vmatmul.f32.gmra.mxu0 %v797
        %v888 = vpop.f32.mrf.mxu0
        %v889 = vadd.f32 0.0, %v888
        %890 = vmatmul.f32.gmra.mxu0 %v800
        %v891 = vpop.f32.mrf.mxu0
        %v892 = vadd.f32 0.0, %v891
        %893 = vdwg.mxu0
        %894 = vmatpush.msra.mxu0 0.0
        %895 = vmatpush.msra.mxu0 0.0
        %896 = vmatpush.msra.mxu0 0.0
        %897 = vmatpush.msra.mxu0 0.0
        %898 = vmatpush.msra.mxu0 0.0
        %899 = vmatpush.msra.mxu0 0.0
        %900 = vmatpush.msra.mxu0 0.0
        %901 = vmatpush.msra.mxu0 0.0
        %902 = vmatpush.msra.mxu0 0.0
        %903 = vmatpush.msra.mxu0 0.0
        %904 = vmatpush.msra.mxu0 0.0
        %905 = vmatpush.msra.mxu0 0.0
        %906 = vmatpush.msra.mxu0 %v652
        %907 = vmatpush.msra.mxu0 %v651
        %908 = vmatpush.msra.mxu0 %v650
        %909 = vmatpush.msra.mxu0 %v649
        %910 = vmatmul.f32.gmra.mxu0 %v797
        %v911 = vpop.f32.mrf.mxu0
        %v912 = vadd.f32 0.0, %v911
        %913 = vmatmul.f32.gmra.mxu0 %v800
        %v914 = vpop.f32.mrf.mxu0
        %v915 = vadd.f32 0.0, %v914
        %916 = vdwg.mxu0
        %917 = vmatpush.msra.mxu0 0.0
        %918 = vmatpush.msra.mxu0 0.0
        %919 = vmatpush.msra.mxu0 0.0
        %920 = vmatpush.msra.mxu0 0.0
        %921 = vmatpush.msra.mxu0 0.0
        %922 = vmatpush.msra.mxu0 0.0
        %923 = vmatpush.msra.mxu0 0.0
        %924 = vmatpush.msra.mxu0 0.0
        %925 = vmatpush.msra.mxu0 0.0
        %926 = vmatpush.msra.mxu0 0.0
        %927 = vmatpush.msra.mxu0 0.0
        %928 = vmatpush.msra.mxu0 0.0
        %929 = vmatpush.msra.mxu0 %v656
        %930 = vmatpush.msra.mxu0 %v655
        %931 = vmatpush.msra.mxu0 %v654
        %932 = vmatpush.msra.mxu0 %v653
        %933 = vmatmul.f32.gmra.mxu0 %v797
        %v934 = vpop.f32.mrf.mxu0
        %v935 = vadd.f32 0.0, %v934
        %936 = vmatmul.f32.gmra.mxu0 %v800
        %v937 = vpop.f32.mrf.mxu0
        %v938 = vadd.f32 0.0, %v937
        %939 = vdwg.mxu0
        %940 = vmatpush.msra.mxu0 0.0
        %941 = vmatpush.msra.mxu0 0.0
        %942 = vmatpush.msra.mxu0 0.0
        %943 = vmatpush.msra.mxu0 0.0
        %944 = vmatpush.msra.mxu0 0.0
        %945 = vmatpush.msra.mxu0 0.0
        %946 = vmatpush.msra.mxu0 0.0
        %947 = vmatpush.msra.mxu0 0.0
        %948 = vmatpush.msra.mxu0 0.0
        %949 = vmatpush.msra.mxu0 0.0
        %950 = vmatpush.msra.mxu0 0.0
        %951 = vmatpush.msra.mxu0 0.0
        %952 = vmatpush.msra.mxu0 %v660
        %953 = vmatpush.msra.mxu0 %v659
        %954 = vmatpush.msra.mxu0 %v658
        %955 = vmatpush.msra.mxu0 %v657
        %956 = vmatmul.f32.gmra.mxu0 %v797
        %v957 = vpop.f32.mrf.mxu0
        %v958 = vadd.f32 0.0, %v957
        %959 = vmatmul.f32.gmra.mxu0 %v800
        %v960 = vpop.f32.mrf.mxu0
        %v961 = vadd.f32 0.0, %v960
        %962 = vdwg.mxu0
        %963 = vmatpush.msra.mxu0 0.0
        %964 = vmatpush.msra.mxu0 0.0
        %965 = vmatpush.msra.mxu0 0.0
        %966 = vmatpush.msra.mxu0 0.0
        %967 = vmatpush.msra.mxu0 0.0
        %968 = vmatpush.msra.mxu0 0.0
        %969 = vmatpush.msra.mxu0 0.0
        %970 = vmatpush.msra.mxu0 0.0
        %971 = vmatpush.msra.mxu0 0.0
        %972 = vmatpush.msra.mxu0 0.0
        %973 = vmatpush.msra.mxu0 0.0
        %974 = vmatpush.msra.mxu0 0.0
        %975 = vmatpush.msra.mxu0 %v664
        %976 = vmatpush.msra.mxu0 %v663
        %977 = vmatpush.msra.mxu0 %v662
        %978 = vmatpush.msra.mxu0 %v661
        %979 = vmatmul.f32.gmra.mxu0 %v797
        %v980 = vpop.f32.mrf.mxu0
        %v981 = vadd.f32 0.0, %v980
        %982 = vmatmul.f32.gmra.mxu0 %v800
        %v983 = vpop.f32.mrf.mxu0
        %v984 = vadd.f32 0.0, %v983
        %985 = vdwg.mxu0
        %986 = vmatpush.msra.mxu0 0.0
        %987 = vmatpush.msra.mxu0 0.0
        %988 = vmatpush.msra.mxu0 0.0
        %989 = vmatpush.msra.mxu0 0.0
        %990 = vmatpush.msra.mxu0 0.0
        %991 = vmatpush.msra.mxu0 0.0
        %992 = vmatpush.msra.mxu0 0.0
        %993 = vmatpush.msra.mxu0 0.0
        %994 = vmatpush.msra.mxu0 0.0
        %995 = vmatpush.msra.mxu0 0.0
        %996 = vmatpush.msra.mxu0 0.0
        %997 = vmatpush.msra.mxu0 0.0
        %998 = vmatpush.msra.mxu0 %v668
        %999 = vmatpush.msra.mxu0 %v667
        %1000 = vmatpush.msra.mxu0 %v666
        %1001 = vmatpush.msra.mxu0 %v665
        %1002 = vmatmul.f32.gmra.mxu0 %v797
        %v1003 = vpop.f32.mrf.mxu0
        %v1004 = vadd.f32 0.0, %v1003
        %1005 = vmatmul.f32.gmra.mxu0 %v800
        %v1006 = vpop.f32.mrf.mxu0
        %v1007 = vadd.f32 0.0, %v1006
        %1008 = vdwg.mxu0
        %1009 = vmatpush.msra.mxu0 0.0
        %1010 = vmatpush.msra.mxu0 0.0
        %1011 = vmatpush.msra.mxu0 0.0
        %1012 = vmatpush.msra.mxu0 0.0
        %1013 = vmatpush.msra.mxu0 0.0
        %1014 = vmatpush.msra.mxu0 0.0
        %1015 = vmatpush.msra.mxu0 0.0
        %1016 = vmatpush.msra.mxu0 0.0
        %1017 = vmatpush.msra.mxu0 0.0
        %1018 = vmatpush.msra.mxu0 0.0
        %1019 = vmatpush.msra.mxu0 0.0
        %1020 = vmatpush.msra.mxu0 0.0
        %1021 = vmatpush.msra.mxu0 %v672
        %1022 = vmatpush.msra.mxu0 %v671
        %1023 = vmatpush.msra.mxu0 %v670
        %1024 = vmatpush.msra.mxu0 %v669
        %1025 = vmatmul.f32.gmra.mxu0 %v797
        %v1026 = vpop.f32.mrf.mxu0
        %v1027 = vadd.f32 0.0, %v1026
        %1028 = vmatmul.f32.gmra.mxu0 %v800
        %v1029 = vpop.f32.mrf.mxu0
        %v1030 = vadd.f32 0.0, %v1029
        %1031 = vdwg.mxu0
        %1032 = vmatpush.msra.mxu0 0.0
        %1033 = vmatpush.msra.mxu0 0.0
        %1034 = vmatpush.msra.mxu0 0.0
        %1035 = vmatpush.msra.mxu0 0.0
        %1036 = vmatpush.msra.mxu0 0.0
        %1037 = vmatpush.msra.mxu0 0.0
        %1038 = vmatpush.msra.mxu0 0.0
        %1039 = vmatpush.msra.mxu0 0.0
        %1040 = vmatpush.msra.mxu0 0.0
        %1041 = vmatpush.msra.mxu0 0.0
        %1042 = vmatpush.msra.mxu0 0.0
        %1043 = vmatpush.msra.mxu0 0.0
        %1044 = vmatpush.msra.mxu0 %v676
        %1045 = vmatpush.msra.mxu0 %v675
        %1046 = vmatpush.msra.mxu0 %v674
        %1047 = vmatpush.msra.mxu0 %v673
        %1048 = vmatmul.f32.gmra.mxu0 %v797
        %v1049 = vpop.f32.mrf.mxu0
        %v1050 = vadd.f32 0.0, %v1049
        %1051 = vmatmul.f32.gmra.mxu0 %v800
        %v1052 = vpop.f32.mrf.mxu0
        %v1053 = vadd.f32 0.0, %v1052
        %1054 = vdwg.mxu0
        %1055 = vmatpush.msra.mxu0 0.0
        %1056 = vmatpush.msra.mxu0 0.0
        %1057 = vmatpush.msra.mxu0 0.0
        %1058 = vmatpush.msra.mxu0 0.0
        %1059 = vmatpush.msra.mxu0 0.0
        %1060 = vmatpush.msra.mxu0 0.0
        %1061 = vmatpush.msra.mxu0 0.0
        %1062 = vmatpush.msra.mxu0 0.0
        %1063 = vmatpush.msra.mxu0 0.0
        %1064 = vmatpush.msra.mxu0 0.0
        %1065 = vmatpush.msra.mxu0 0.0
        %1066 = vmatpush.msra.mxu0 0.0
        %1067 = vmatpush.msra.mxu0 %v680
        %1068 = vmatpush.msra.mxu0 %v679
        %1069 = vmatpush.msra.mxu0 %v678
        %1070 = vmatpush.msra.mxu0 %v677
        %1071 = vmatmul.f32.gmra.mxu0 %v797
        %v1072 = vpop.f32.mrf.mxu0
        %v1073 = vadd.f32 0.0, %v1072
        %1074 = vmatmul.f32.gmra.mxu0 %v800
        %v1075 = vpop.f32.mrf.mxu0
        %v1076 = vadd.f32 0.0, %v1075
        %1077 = vdwg.mxu0
        %v1078 = vld [vmem:[%s575] sm:$0x1]
        %vm1079 = vcmp.eq.f32.partialorder %v1078, 0.0
        %vm1080 = vcmask 64512
        %v1082 = vsel %vm1080, %v820, 0
        %v1085 = vsel %vm1080, %v912, 0
        %1087 = vmatpush.xpose.msra.mxu0 0.0
        %1088 = vmatpush.xpose.msra.mxu0 0.0
        %1089 = vmatpush.xpose.msra.mxu0 0.0
        %1090 = vmatpush.xpose.msra.mxu0 0.0
        %1091 = vmatpush.xpose.msra.mxu0 0.0
        %1092 = vmatpush.xpose.msra.mxu0 0.0
        %1093 = vmatpush.xpose.msra.mxu0 0.0
        %1094 = vmatpush.xpose.msra.mxu0 0.0
        %1095 = vmatpush.xpose.msra.mxu0 0.0
        %1096 = vmatpush.xpose.msra.mxu0 0.0
        %1097 = vmatpush.xpose.msra.mxu0 0.0
        %1098 = vmatpush.xpose.msra.mxu0 0.0
        %1099 = vmatpush.xpose.msra.mxu0 0.0
        %1100 = vmatpush.xpose.msra.mxu0 0.0
        %1101 = vmatpush.xpose.msra.mxu0 0.0
        %1102 = vmatpush.xpose.msra.mxu0 %v1085
        %1103 = vmatmul.f32.gmra.mxu0 %v1082
        %v1104 = vpop.f32.mrf.mxu0
        %v1105 = vadd.f32 0.0, %v1104
        %1106 = vdwg.mxu0
        %v1107 = vmul.f32 %v1105, 0.35355338
        %v1108 = vsel %vm1079, 1, 0
        %v1109 = vperm.slane %v1108, 0
        %vm1110 = vcmp.eq.s32.totalorder %v1109, 1
        %v1111 = vsel %vm1110, -1e+09, %v1107
        %v1112 = vsel %vm1080, %v1111, -inf
        %1113 = vmax.xlane.f32.xlu0 %v1112
        %v1114 = vpop.xlane.xlu0 %1113
        %v1115 = vsub.f32 %v1111, %v1114
        %v1116 = vmul.f32 %v1115, 1.442695
        %v1117 = vpow.pop %v1116
        %v1118 = vsel %vm1080, %v1117, 0.0
        %1119 = vadd.xlane.f32.xlu0 %v1118
        %v1120 = vpop.xlane.xlu0 %1119
        %v1121 = vrcp.pop %v1120
        %v1122 = vmul.f32 %v1120, %v1121
        %v1123 = vsub.f32 1.0, %v1122
        %v1124 = vmul.f32 %v1121, %v1123
        %v1125 = vadd.f32 %v1121, %v1124
        %vm1126 = vweird.f32 %v1120
        %vm1127 = vweird.f32 %v1121
        %vm1128 = vmor %vm1126, %vm1127
        %v1129 = vsel %vm1128, %v1121, %v1125
        %v1130 = vand.u32 2147483647, %v1120
        %vm1131 = vcmp.eq.f32.partialorder %v1130, 8.507059e+37
        %v1132 = vand.u32 %v1120, 2147483648
        %v1133 = vor.u32 1.1754944e-38, %v1132
        %v1134 = vsel %vm1131, %v1133, %v1129
        %v1135 = vmul.f32 %v1117, %v1134
        %v1137 = vsel %vm1080, %v1135, 0
        %1139 = vmatpush.msra.mxu0 0.0
        %1140 = vmatpush.msra.mxu0 0.0
        %1141 = vmatpush.msra.mxu0 0.0
        %1142 = vmatpush.msra.mxu0 0.0
        %1143 = vmatpush.msra.mxu0 0.0
        %1144 = vmatpush.msra.mxu0 0.0
        %1145 = vmatpush.msra.mxu0 0.0
        %1146 = vmatpush.msra.mxu0 0.0
        %1147 = vmatpush.msra.mxu0 0.0
        %1148 = vmatpush.msra.mxu0 0.0
        %1149 = vmatpush.msra.mxu0 0.0
        %1150 = vmatpush.msra.mxu0 0.0
        %1151 = vmatpush.msra.mxu0 0.0
        %1152 = vmatpush.msra.mxu0 0.0
        %1153 = vmatpush.msra.mxu0 0.0
        %1154 = vmatpush.msra.mxu0 %v1004
        %1155 = vmatmul.f32.gmra.mxu0 %v1137
        %v1156 = vpop.f32.mrf.mxu0
        %v1157 = vadd.f32 0.0, %v1156
        %1158 = vdwg.mxu0
        %v1160 = vsel %vm1080, %v843, 0
        %v1163 = vsel %vm1080, %v935, 0
        %1165 = vmatpush.xpose.msra.mxu0 0.0
        %1166 = vmatpush.xpose.msra.mxu0 0.0
        %1167 = vmatpush.xpose.msra.mxu0 0.0
        %1168 = vmatpush.xpose.msra.mxu0 0.0
        %1169 = vmatpush.xpose.msra.mxu0 0.0
        %1170 = vmatpush.xpose.msra.mxu0 0.0
        %1171 = vmatpush.xpose.msra.mxu0 0.0
        %1172 = vmatpush.xpose.msra.mxu0 0.0
        %1173 = vmatpush.xpose.msra.mxu0 0.0
        %1174 = vmatpush.xpose.msra.mxu0 0.0
        %1175 = vmatpush.xpose.msra.mxu0 0.0
        %1176 = vmatpush.xpose.msra.mxu0 0.0
        %1177 = vmatpush.xpose.msra.mxu0 0.0
        %1178 = vmatpush.xpose.msra.mxu0 0.0
        %1179 = vmatpush.xpose.msra.mxu0 0.0
        %1180 = vmatpush.xpose.msra.mxu0 %v1163
        %1181 = vmatmul.f32.gmra.mxu0 %v1160
        %v1182 = vpop.f32.mrf.mxu0
        %v1183 = vadd.f32 0.0, %v1182
        %1184 = vdwg.mxu0
        %v1185 = vmul.f32 %v1183, 0.35355338
        %v1186 = vsel %vm1110, -1e+09, %v1185
        %v1187 = vsel %vm1080, %v1186, -inf
        %1188 = vmax.xlane.f32.xlu0 %v1187
        %v1189 = vpop.xlane.xlu0 %1188
        %v1190 = vsub.f32 %v1186, %v1189
        %v1191 = vmul.f32 %v1190, 1.442695
        %v1192 = vpow.pop %v1191
        %v1193 = vsel %vm1080, %v1192, 0.0
        %1194 = vadd.xlane.f32.xlu0 %v1193
        %v1195 = vpop.xlane.xlu0 %1194
        %v1196 = vrcp.pop %v1195
        %v1197 = vmul.f32 %v1195, %v1196
        %v1198 = vsub.f32 1.0, %v1197
        %v1199 = vmul.f32 %v1196, %v1198
        %v1200 = vadd.f32 %v1196, %v1199
        %vm1201 = vweird.f32 %v1195
        %vm1202 = vweird.f32 %v1196
        %vm1203 = vmor %vm1201, %vm1202
        %v1204 = vsel %vm1203, %v1196, %v1200
        %v1205 = vand.u32 2147483647, %v1195
        %vm1206 = vcmp.eq.f32.partialorder %v1205, 8.507059e+37
        %v1207 = vand.u32 %v1195, 2147483648
        %v1208 = vor.u32 1.1754944e-38, %v1207
        %v1209 = vsel %vm1206, %v1208, %v1204
        %v1210 = vmul.f32 %v1192, %v1209
        %v1212 = vsel %vm1080, %v1210, 0
        %1214 = vmatpush.msra.mxu0 0.0
        %1215 = vmatpush.msra.mxu0 0.0
        %1216 = vmatpush.msra.mxu0 0.0
        %1217 = vmatpush.msra.mxu0 0.0
        %1218 = vmatpush.msra.mxu0 0.0
        %1219 = vmatpush.msra.mxu0 0.0
        %1220 = vmatpush.msra.mxu0 0.0
        %1221 = vmatpush.msra.mxu0 0.0
        %1222 = vmatpush.msra.mxu0 0.0
        %1223 = vmatpush.msra.mxu0 0.0
        %1224 = vmatpush.msra.mxu0 0.0
        %1225 = vmatpush.msra.mxu0 0.0
        %1226 = vmatpush.msra.mxu0 0.0
        %1227 = vmatpush.msra.mxu0 0.0
        %1228 = vmatpush.msra.mxu0 0.0
        %1229 = vmatpush.msra.mxu0 %v1027
        %1230 = vmatmul.f32.gmra.mxu0 %v1212
        %v1231 = vpop.f32.mrf.mxu0
        %v1232 = vadd.f32 0.0, %v1231
        %1233 = vdwg.mxu0
        %v1235 = vsel %vm1080, %v1232, 0
        %1237 = vmatpush.msra.mxu0 0.0
        %1238 = vmatpush.msra.mxu0 0.0
        %1239 = vmatpush.msra.mxu0 0.0
        %1240 = vmatpush.msra.mxu0 0.0
        %1241 = vmatpush.msra.mxu0 0.0
        %1242 = vmatpush.msra.mxu0 0.0
        %1243 = vmatpush.msra.mxu0 0.0
        %1244 = vmatpush.msra.mxu0 0.0
        %1245 = vmatpush.msra.mxu0 0.0
        %1246 = vmatpush.msra.mxu0 0.0
        %1247 = vmatpush.msra.mxu0 0.0
        %1248 = vmatpush.msra.mxu0 0.0
        %1249 = vmatpush.msra.mxu0 0.0
        %1250 = vmatpush.msra.mxu0 0.0
        %1251 = vmatpush.msra.mxu0 0.0
        %1252 = vmatpush.msra.mxu0 %v682
        %1253 = vmatmul.f32.gmra.mxu0 %v1235
        %v1254 = vpop.f32.mrf.mxu0
        %v1255 = vadd.f32 0.0, %v1254
        %1256 = vdwg.mxu0
        %v1258 = vsel %vm1080, %v1157, 0
        %1260 = vmatpush.msra.mxu0 0.0
        %1261 = vmatpush.msra.mxu0 0.0
        %1262 = vmatpush.msra.mxu0 0.0
        %1263 = vmatpush.msra.mxu0 0.0
        %1264 = vmatpush.msra.mxu0 0.0
        %1265 = vmatpush.msra.mxu0 0.0
        %1266 = vmatpush.msra.mxu0 0.0
        %1267 = vmatpush.msra.mxu0 0.0
        %1268 = vmatpush.msra.mxu0 0.0
        %1269 = vmatpush.msra.mxu0 0.0
        %1270 = vmatpush.msra.mxu0 0.0
        %1271 = vmatpush.msra.mxu0 0.0
        %1272 = vmatpush.msra.mxu0 0.0
        %1273 = vmatpush.msra.mxu0 0.0
        %1274 = vmatpush.msra.mxu0 0.0
        %1275 = vmatpush.msra.mxu0 %v681
        %1276 = vmatmul.f32.gmra.mxu0 %v1258
        %v1277 = vpop.f32.mrf.mxu0
        %v1278 = vadd.f32 %v1255, %v1277
        %1279 = vdwg.mxu0
        %v1281 = vsel %vm1080, %v866, 0
        %v1284 = vsel %vm1080, %v958, 0
        %1286 = vmatpush.xpose.msra.mxu0 0.0
        %1287 = vmatpush.xpose.msra.mxu0 0.0
        %1288 = vmatpush.xpose.msra.mxu0 0.0
        %1289 = vmatpush.xpose.msra.mxu0 0.0
        %1290 = vmatpush.xpose.msra.mxu0 0.0
        %1291 = vmatpush.xpose.msra.mxu0 0.0
        %1292 = vmatpush.xpose.msra.mxu0 0.0
        %1293 = vmatpush.xpose.msra.mxu0 0.0
        %1294 = vmatpush.xpose.msra.mxu0 0.0
        %1295 = vmatpush.xpose.msra.mxu0 0.0
        %1296 = vmatpush.xpose.msra.mxu0 0.0
        %1297 = vmatpush.xpose.msra.mxu0 0.0
        %1298 = vmatpush.xpose.msra.mxu0 0.0
        %1299 = vmatpush.xpose.msra.mxu0 0.0
        %1300 = vmatpush.xpose.msra.mxu0 0.0
        %1301 = vmatpush.xpose.msra.mxu0 %v1284
        %1302 = vmatmul.f32.gmra.mxu0 %v1281
        %v1303 = vpop.f32.mrf.mxu0
        %v1304 = vadd.f32 0.0, %v1303
        %1305 = vdwg.mxu0
        %v1306 = vmul.f32 %v1304, 0.35355338
        %v1307 = vsel %vm1110, -1e+09, %v1306
        %v1308 = vsel %vm1080, %v1307, -inf
        %1309 = vmax.xlane.f32.xlu0 %v1308
        %v1310 = vpop.xlane.xlu0 %1309
        %v1311 = vsub.f32 %v1307, %v1310
        %v1312 = vmul.f32 %v1311, 1.442695
        %v1313 = vpow.pop %v1312
        %v1314 = vsel %vm1080, %v1313, 0.0
        %1315 = vadd.xlane.f32.xlu0 %v1314
        %v1316 = vpop.xlane.xlu0 %1315
        %v1317 = vrcp.pop %v1316
        %v1318 = vmul.f32 %v1316, %v1317
        %v1319 = vsub.f32 1.0, %v1318
        %v1320 = vmul.f32 %v1317, %v1319
        %v1321 = vadd.f32 %v1317, %v1320
        %vm1322 = vweird.f32 %v1316
        %vm1323 = vweird.f32 %v1317
        %vm1324 = vmor %vm1322, %vm1323
        %v1325 = vsel %vm1324, %v1317, %v1321
        %v1326 = vand.u32 2147483647, %v1316
        %vm1327 = vcmp.eq.f32.partialorder %v1326, 8.507059e+37
        %v1328 = vand.u32 %v1316, 2147483648
        %v1329 = vor.u32 1.1754944e-38, %v1328
        %v1330 = vsel %vm1327, %v1329, %v1325
        %v1331 = vmul.f32 %v1313, %v1330
        %v1333 = vsel %vm1080, %v1331, 0
        %1335 = vmatpush.msra.mxu0 0.0
        %1336 = vmatpush.msra.mxu0 0.0
        %1337 = vmatpush.msra.mxu0 0.0
        %1338 = vmatpush.msra.mxu0 0.0
        %1339 = vmatpush.msra.mxu0 0.0
        %1340 = vmatpush.msra.mxu0 0.0
        %1341 = vmatpush.msra.mxu0 0.0
        %1342 = vmatpush.msra.mxu0 0.0
        %1343 = vmatpush.msra.mxu0 0.0
        %1344 = vmatpush.msra.mxu0 0.0
        %1345 = vmatpush.msra.mxu0 0.0
        %1346 = vmatpush.msra.mxu0 0.0
        %1347 = vmatpush.msra.mxu0 0.0
        %1348 = vmatpush.msra.mxu0 0.0
        %1349 = vmatpush.msra.mxu0 0.0
        %1350 = vmatpush.msra.mxu0 %v1050
        %1351 = vmatmul.f32.gmra.mxu0 %v1333
        %v1352 = vpop.f32.mrf.mxu0
        %v1353 = vadd.f32 0.0, %v1352
        %1354 = vdwg.mxu0
        %v1356 = vsel %vm1080, %v1353, 0
        %1358 = vmatpush.msra.mxu0 0.0
        %1359 = vmatpush.msra.mxu0 0.0
        %1360 = vmatpush.msra.mxu0 0.0
        %1361 = vmatpush.msra.mxu0 0.0
        %1362 = vmatpush.msra.mxu0 0.0
        %1363 = vmatpush.msra.mxu0 0.0
        %1364 = vmatpush.msra.mxu0 0.0
        %1365 = vmatpush.msra.mxu0 0.0
        %1366 = vmatpush.msra.mxu0 0.0
        %1367 = vmatpush.msra.mxu0 0.0
        %1368 = vmatpush.msra.mxu0 0.0
        %1369 = vmatpush.msra.mxu0 0.0
        %1370 = vmatpush.msra.mxu0 0.0
        %1371 = vmatpush.msra.mxu0 0.0
        %1372 = vmatpush.msra.mxu0 0.0
        %1373 = vmatpush.msra.mxu0 %v683
        %1374 = vmatmul.f32.gmra.mxu0 %v1356
        %v1375 = vpop.f32.mrf.mxu0
        %v1376 = vadd.f32 0.0, %v1375
        %1377 = vdwg.mxu0
        %v1378 = vadd.f32 %v1278, %v1376
        %v1380 = vsel %vm1080, %v889, 0
        %v1383 = vsel %vm1080, %v981, 0
        %1385 = vmatpush.xpose.msra.mxu0 0.0
        %1386 = vmatpush.xpose.msra.mxu0 0.0
        %1387 = vmatpush.xpose.msra.mxu0 0.0
        %1388 = vmatpush.xpose.msra.mxu0 0.0
        %1389 = vmatpush.xpose.msra.mxu0 0.0
        %1390 = vmatpush.xpose.msra.mxu0 0.0
        %1391 = vmatpush.xpose.msra.mxu0 0.0
        %1392 = vmatpush.xpose.msra.mxu0 0.0
        %1393 = vmatpush.xpose.msra.mxu0 0.0
        %1394 = vmatpush.xpose.msra.mxu0 0.0
        %1395 = vmatpush.xpose.msra.mxu0 0.0
        %1396 = vmatpush.xpose.msra.mxu0 0.0
        %1397 = vmatpush.xpose.msra.mxu0 0.0
        %1398 = vmatpush.xpose.msra.mxu0 0.0
        %1399 = vmatpush.xpose.msra.mxu0 0.0
        %1400 = vmatpush.xpose.msra.mxu0 %v1383
        %1401 = vmatmul.f32.gmra.mxu0 %v1380
        %v1402 = vpop.f32.mrf.mxu0
        %v1403 = vadd.f32 0.0, %v1402
        %1404 = vdwg.mxu0
        %v1405 = vmul.f32 %v1403, 0.35355338
        %v1406 = vsel %vm1110, -1e+09, %v1405
        %v1407 = vsel %vm1080, %v1406, -inf
        %1408 = vmax.xlane.f32.xlu0 %v1407
        %v1409 = vpop.xlane.xlu0 %1408
        %v1410 = vsub.f32 %v1406, %v1409
        %v1411 = vmul.f32 %v1410, 1.442695
        %v1412 = vpow.pop %v1411
        %v1413 = vsel %vm1080, %v1412, 0.0
        %1414 = vadd.xlane.f32.xlu0 %v1413
        %v1415 = vpop.xlane.xlu0 %1414
        %v1416 = vrcp.pop %v1415
        %v1417 = vmul.f32 %v1415, %v1416
        %v1418 = vsub.f32 1.0, %v1417
        %v1419 = vmul.f32 %v1416, %v1418
        %v1420 = vadd.f32 %v1416, %v1419
        %vm1421 = vweird.f32 %v1415
        %vm1422 = vweird.f32 %v1416
        %vm1423 = vmor %vm1421, %vm1422
        %v1424 = vsel %vm1423, %v1416, %v1420
        %v1425 = vand.u32 2147483647, %v1415
        %vm1426 = vcmp.eq.f32.partialorder %v1425, 8.507059e+37
        %v1427 = vand.u32 %v1415, 2147483648
        %v1428 = vor.u32 1.1754944e-38, %v1427
        %v1429 = vsel %vm1426, %v1428, %v1424
        %v1430 = vmul.f32 %v1412, %v1429
        %v1432 = vsel %vm1080, %v1430, 0
        %1434 = vmatpush.msra.mxu0 0.0
        %1435 = vmatpush.msra.mxu0 0.0
        %1436 = vmatpush.msra.mxu0 0.0
        %1437 = vmatpush.msra.mxu0 0.0
        %1438 = vmatpush.msra.mxu0 0.0
        %1439 = vmatpush.msra.mxu0 0.0
        %1440 = vmatpush.msra.mxu0 0.0
        %1441 = vmatpush.msra.mxu0 0.0
        %1442 = vmatpush.msra.mxu0 0.0
        %1443 = vmatpush.msra.mxu0 0.0
        %1444 = vmatpush.msra.mxu0 0.0
        %1445 = vmatpush.msra.mxu0 0.0
        %1446 = vmatpush.msra.mxu0 0.0
        %1447 = vmatpush.msra.mxu0 0.0
        %1448 = vmatpush.msra.mxu0 0.0
        %1449 = vmatpush.msra.mxu0 %v1073
        %1450 = vmatmul.f32.gmra.mxu0 %v1432
        %v1451 = vpop.f32.mrf.mxu0
        %v1452 = vadd.f32 0.0, %v1451
        %1453 = vdwg.mxu0
        %v1455 = vsel %vm1080, %v1452, 0
        %1457 = vmatpush.msra.mxu0 0.0
        %1458 = vmatpush.msra.mxu0 0.0
        %1459 = vmatpush.msra.mxu0 0.0
        %1460 = vmatpush.msra.mxu0 0.0
        %1461 = vmatpush.msra.mxu0 0.0
        %1462 = vmatpush.msra.mxu0 0.0
        %1463 = vmatpush.msra.mxu0 0.0
        %1464 = vmatpush.msra.mxu0 0.0
        %1465 = vmatpush.msra.mxu0 0.0
        %1466 = vmatpush.msra.mxu0 0.0
        %1467 = vmatpush.msra.mxu0 0.0
        %1468 = vmatpush.msra.mxu0 0.0
        %1469 = vmatpush.msra.mxu0 0.0
        %1470 = vmatpush.msra.mxu0 0.0
        %1471 = vmatpush.msra.mxu0 0.0
        %1472 = vmatpush.msra.mxu0 %v684
        %1473 = vmatmul.f32.gmra.mxu0 %v1455
        %v1474 = vpop.f32.mrf.mxu0
        %v1475 = vadd.f32 0.0, %v1474
        %1476 = vdwg.mxu0
        %v1477 = vadd.f32 %v1378, %v1475
        %s1478 = scalar_lea.vmem %s575, 1
        %v1479 = vld [vmem:[%s1478] sm:$0x1]
        %vm1480 = vcmp.eq.f32.partialorder %v1479, 0.0
        %v1482 = vsel %vm1080, %v823, 0
        %v1485 = vsel %vm1080, %v915, 0
        %1487 = vmatpush.xpose.msra.mxu0 0.0
        %1488 = vmatpush.xpose.msra.mxu0 0.0
        %1489 = vmatpush.xpose.msra.mxu0 0.0
        %1490 = vmatpush.xpose.msra.mxu0 0.0
        %1491 = vmatpush.xpose.msra.mxu0 0.0
        %1492 = vmatpush.xpose.msra.mxu0 0.0
        %1493 = vmatpush.xpose.msra.mxu0 0.0
        %1494 = vmatpush.xpose.msra.mxu0 0.0
        %1495 = vmatpush.xpose.msra.mxu0 0.0
        %1496 = vmatpush.xpose.msra.mxu0 0.0
        %1497 = vmatpush.xpose.msra.mxu0 0.0
        %1498 = vmatpush.xpose.msra.mxu0 0.0
        %1499 = vmatpush.xpose.msra.mxu0 0.0
        %1500 = vmatpush.xpose.msra.mxu0 0.0
        %1501 = vmatpush.xpose.msra.mxu0 0.0
        %1502 = vmatpush.xpose.msra.mxu0 %v1485
        %1503 = vmatmul.f32.gmra.mxu0 %v1482
        %v1504 = vpop.f32.mrf.mxu0
        %v1505 = vadd.f32 0.0, %v1504
        %1506 = vdwg.mxu0
        %v1507 = vmul.f32 %v1505, 0.35355338
        %v1508 = vsel %vm1480, 1, 0
        %v1509 = vperm.slane %v1508, 0
        %vm1510 = vcmp.eq.s32.totalorder %v1509, 1
        %v1511 = vsel %vm1510, -1e+09, %v1507
        %v1512 = vsel %vm1080, %v1511, -inf
        %1513 = vmax.xlane.f32.xlu0 %v1512
        %v1514 = vpop.xlane.xlu0 %1513
        %v1515 = vsub.f32 %v1511, %v1514
        %v1516 = vmul.f32 %v1515, 1.442695
        %v1517 = vpow.pop %v1516
        %v1518 = vsel %vm1080, %v1517, 0.0
        %1519 = vadd.xlane.f32.xlu0 %v1518
        %v1520 = vpop.xlane.xlu0 %1519
        %v1521 = vrcp.pop %v1520
        %v1522 = vmul.f32 %v1520, %v1521
        %v1523 = vsub.f32 1.0, %v1522
        %v1524 = vmul.f32 %v1521, %v1523
        %v1525 = vadd.f32 %v1521, %v1524
        %vm1526 = vweird.f32 %v1520
        %vm1527 = vweird.f32 %v1521
        %vm1528 = vmor %vm1526, %vm1527
        %v1529 = vsel %vm1528, %v1521, %v1525
        %v1530 = vand.u32 2147483647, %v1520
        %vm1531 = vcmp.eq.f32.partialorder %v1530, 8.507059e+37
        %v1532 = vand.u32 %v1520, 2147483648
        %v1533 = vor.u32 1.1754944e-38, %v1532
        %v1534 = vsel %vm1531, %v1533, %v1529
        %v1535 = vmul.f32 %v1517, %v1534
        %v1537 = vsel %vm1080, %v1535, 0
        %1539 = vmatpush.msra.mxu0 0.0
        %1540 = vmatpush.msra.mxu0 0.0
        %1541 = vmatpush.msra.mxu0 0.0
        %1542 = vmatpush.msra.mxu0 0.0
        %1543 = vmatpush.msra.mxu0 0.0
        %1544 = vmatpush.msra.mxu0 0.0
        %1545 = vmatpush.msra.mxu0 0.0
        %1546 = vmatpush.msra.mxu0 0.0
        %1547 = vmatpush.msra.mxu0 0.0
        %1548 = vmatpush.msra.mxu0 0.0
        %1549 = vmatpush.msra.mxu0 0.0
        %1550 = vmatpush.msra.mxu0 0.0
        %1551 = vmatpush.msra.mxu0 0.0
        %1552 = vmatpush.msra.mxu0 0.0
        %1553 = vmatpush.msra.mxu0 0.0
        %1554 = vmatpush.msra.mxu0 %v1007
        %1555 = vmatmul.f32.gmra.mxu0 %v1537
        %v1556 = vpop.f32.mrf.mxu0
        %v1557 = vadd.f32 0.0, %v1556
        %1558 = vdwg.mxu0
        %v1560 = vsel %vm1080, %v846, 0
        %v1563 = vsel %vm1080, %v938, 0
        %1565 = vmatpush.xpose.msra.mxu0 0.0
        %1566 = vmatpush.xpose.msra.mxu0 0.0
        %1567 = vmatpush.xpose.msra.mxu0 0.0
        %1568 = vmatpush.xpose.msra.mxu0 0.0
        %1569 = vmatpush.xpose.msra.mxu0 0.0
        %1570 = vmatpush.xpose.msra.mxu0 0.0
        %1571 = vmatpush.xpose.msra.mxu0 0.0
        %1572 = vmatpush.xpose.msra.mxu0 0.0
        %1573 = vmatpush.xpose.msra.mxu0 0.0
        %1574 = vmatpush.xpose.msra.mxu0 0.0
        %1575 = vmatpush.xpose.msra.mxu0 0.0
        %1576 = vmatpush.xpose.msra.mxu0 0.0
        %1577 = vmatpush.xpose.msra.mxu0 0.0
        %1578 = vmatpush.xpose.msra.mxu0 0.0
        %1579 = vmatpush.xpose.msra.mxu0 0.0
        %1580 = vmatpush.xpose.msra.mxu0 %v1563
        %1581 = vmatmul.f32.gmra.mxu0 %v1560
        %v1582 = vpop.f32.mrf.mxu0
        %v1583 = vadd.f32 0.0, %v1582
        %1584 = vdwg.mxu0
        %v1585 = vmul.f32 %v1583, 0.35355338
        %v1586 = vsel %vm1510, -1e+09, %v1585
        %v1587 = vsel %vm1080, %v1586, -inf
        %1588 = vmax.xlane.f32.xlu0 %v1587
        %v1589 = vpop.xlane.xlu0 %1588
        %v1590 = vsub.f32 %v1586, %v1589
        %v1591 = vmul.f32 %v1590, 1.442695
        %v1592 = vpow.pop %v1591
        %v1593 = vsel %vm1080, %v1592, 0.0
        %1594 = vadd.xlane.f32.xlu0 %v1593
        %v1595 = vpop.xlane.xlu0 %1594
        %v1596 = vrcp.pop %v1595
        %v1597 = vmul.f32 %v1595, %v1596
        %v1598 = vsub.f32 1.0, %v1597
        %v1599 = vmul.f32 %v1596, %v1598
        %v1600 = vadd.f32 %v1596, %v1599
        %vm1601 = vweird.f32 %v1595
        %vm1602 = vweird.f32 %v1596
        %vm1603 = vmor %vm1601, %vm1602
        %v1604 = vsel %vm1603, %v1596, %v1600
        %v1605 = vand.u32 2147483647, %v1595
        %vm1606 = vcmp.eq.f32.partialorder %v1605, 8.507059e+37
        %v1607 = vand.u32 %v1595, 2147483648
        %v1608 = vor.u32 1.1754944e-38, %v1607
        %v1609 = vsel %vm1606, %v1608, %v1604
        %v1610 = vmul.f32 %v1592, %v1609
        %v1612 = vsel %vm1080, %v1610, 0
        %1614 = vmatpush.msra.mxu0 0.0
        %1615 = vmatpush.msra.mxu0 0.0
        %1616 = vmatpush.msra.mxu0 0.0
        %1617 = vmatpush.msra.mxu0 0.0
        %1618 = vmatpush.msra.mxu0 0.0
        %1619 = vmatpush.msra.mxu0 0.0
        %1620 = vmatpush.msra.mxu0 0.0
        %1621 = vmatpush.msra.mxu0 0.0
        %1622 = vmatpush.msra.mxu0 0.0
        %1623 = vmatpush.msra.mxu0 0.0
        %1624 = vmatpush.msra.mxu0 0.0
        %1625 = vmatpush.msra.mxu0 0.0
        %1626 = vmatpush.msra.mxu0 0.0
        %1627 = vmatpush.msra.mxu0 0.0
        %1628 = vmatpush.msra.mxu0 0.0
        %1629 = vmatpush.msra.mxu0 %v1030
        %1630 = vmatmul.f32.gmra.mxu0 %v1612
        %v1631 = vpop.f32.mrf.mxu0
        %v1632 = vadd.f32 0.0, %v1631
        %1633 = vdwg.mxu0
        %v1635 = vsel %vm1080, %v1632, 0
        %1637 = vmatpush.msra.mxu0 0.0
        %1638 = vmatpush.msra.mxu0 0.0
        %1639 = vmatpush.msra.mxu0 0.0
        %1640 = vmatpush.msra.mxu0 0.0
        %1641 = vmatpush.msra.mxu0 0.0
        %1642 = vmatpush.msra.mxu0 0.0
        %1643 = vmatpush.msra.mxu0 0.0
        %1644 = vmatpush.msra.mxu0 0.0
        %1645 = vmatpush.msra.mxu0 0.0
        %1646 = vmatpush.msra.mxu0 0.0
        %1647 = vmatpush.msra.mxu0 0.0
        %1648 = vmatpush.msra.mxu0 0.0
        %1649 = vmatpush.msra.mxu0 0.0
        %1650 = vmatpush.msra.mxu0 0.0
        %1651 = vmatpush.msra.mxu0 0.0
        %1652 = vmatpush.msra.mxu0 %v682
        %1653 = vmatmul.f32.gmra.mxu0 %v1635
        %v1654 = vpop.f32.mrf.mxu0
        %v1655 = vadd.f32 0.0, %v1654
        %1656 = vdwg.mxu0
        %v1658 = vsel %vm1080, %v1557, 0
        %1660 = vmatpush.msra.mxu0 0.0
        %1661 = vmatpush.msra.mxu0 0.0
        %1662 = vmatpush.msra.mxu0 0.0
        %1663 = vmatpush.msra.mxu0 0.0
        %1664 = vmatpush.msra.mxu0 0.0
        %1665 = vmatpush.msra.mxu0 0.0
        %1666 = vmatpush.msra.mxu0 0.0
        %1667 = vmatpush.msra.mxu0 0.0
        %1668 = vmatpush.msra.mxu0 0.0
        %1669 = vmatpush.msra.mxu0 0.0
        %1670 = vmatpush.msra.mxu0 0.0
        %1671 = vmatpush.msra.mxu0 0.0
        %1672 = vmatpush.msra.mxu0 0.0
        %1673 = vmatpush.msra.mxu0 0.0
        %1674 = vmatpush.msra.mxu0 0.0
        %1675 = vmatpush.msra.mxu0 %v681
        %1676 = vmatmul.f32.gmra.mxu0 %v1658
        %v1677 = vpop.f32.mrf.mxu0
        %v1678 = vadd.f32 %v1655, %v1677
        %1679 = vdwg.mxu0
        %v1681 = vsel %vm1080, %v869, 0
        %v1684 = vsel %vm1080, %v961, 0
        %1686 = vmatpush.xpose.msra.mxu0 0.0
        %1687 = vmatpush.xpose.msra.mxu0 0.0
        %1688 = vmatpush.xpose.msra.mxu0 0.0
        %1689 = vmatpush.xpose.msra.mxu0 0.0
        %1690 = vmatpush.xpose.msra.mxu0 0.0
        %1691 = vmatpush.xpose.msra.mxu0 0.0
        %1692 = vmatpush.xpose.msra.mxu0 0.0
        %1693 = vmatpush.xpose.msra.mxu0 0.0
        %1694 = vmatpush.xpose.msra.mxu0 0.0
        %1695 = vmatpush.xpose.msra.mxu0 0.0
        %1696 = vmatpush.xpose.msra.mxu0 0.0
        %1697 = vmatpush.xpose.msra.mxu0 0.0
        %1698 = vmatpush.xpose.msra.mxu0 0.0
        %1699 = vmatpush.xpose.msra.mxu0 0.0
        %1700 = vmatpush.xpose.msra.mxu0 0.0
        %1701 = vmatpush.xpose.msra.mxu0 %v1684
        %1702 = vmatmul.f32.gmra.mxu0 %v1681
        %v1703 = vpop.f32.mrf.mxu0
        %v1704 = vadd.f32 0.0, %v1703
        %1705 = vdwg.mxu0
        %v1706 = vmul.f32 %v1704, 0.35355338
        %v1707 = vsel %vm1510, -1e+09, %v1706
        %v1708 = vsel %vm1080, %v1707, -inf
        %1709 = vmax.xlane.f32.xlu0 %v1708
        %v1710 = vpop.xlane.xlu0 %1709
        %v1711 = vsub.f32 %v1707, %v1710
        %v1712 = vmul.f32 %v1711, 1.442695
        %v1713 = vpow.pop %v1712
        %v1714 = vsel %vm1080, %v1713, 0.0
        %1715 = vadd.xlane.f32.xlu0 %v1714
        %v1716 = vpop.xlane.xlu0 %1715
        %v1717 = vrcp.pop %v1716
        %v1718 = vmul.f32 %v1716, %v1717
        %v1719 = vsub.f32 1.0, %v1718
        %v1720 = vmul.f32 %v1717, %v1719
        %v1721 = vadd.f32 %v1717, %v1720
        %vm1722 = vweird.f32 %v1716
        %vm1723 = vweird.f32 %v1717
        %vm1724 = vmor %vm1722, %vm1723
        %v1725 = vsel %vm1724, %v1717, %v1721
        %v1726 = vand.u32 2147483647, %v1716
        %vm1727 = vcmp.eq.f32.partialorder %v1726, 8.507059e+37
        %v1728 = vand.u32 %v1716, 2147483648
        %v1729 = vor.u32 1.1754944e-38, %v1728
        %v1730 = vsel %vm1727, %v1729, %v1725
        %v1731 = vmul.f32 %v1713, %v1730
        %v1733 = vsel %vm1080, %v1731, 0
        %1735 = vmatpush.msra.mxu0 0.0
        %1736 = vmatpush.msra.mxu0 0.0
        %1737 = vmatpush.msra.mxu0 0.0
        %1738 = vmatpush.msra.mxu0 0.0
        %1739 = vmatpush.msra.mxu0 0.0
        %1740 = vmatpush.msra.mxu0 0.0
        %1741 = vmatpush.msra.mxu0 0.0
        %1742 = vmatpush.msra.mxu0 0.0
        %1743 = vmatpush.msra.mxu0 0.0
        %1744 = vmatpush.msra.mxu0 0.0
        %1745 = vmatpush.msra.mxu0 0.0
        %1746 = vmatpush.msra.mxu0 0.0
        %1747 = vmatpush.msra.mxu0 0.0
        %1748 = vmatpush.msra.mxu0 0.0
        %1749 = vmatpush.msra.mxu0 0.0
        %1750 = vmatpush.msra.mxu0 %v1053
        %1751 = vmatmul.f32.gmra.mxu0 %v1733
        %v1752 = vpop.f32.mrf.mxu0
        %v1753 = vadd.f32 0.0, %v1752
        %1754 = vdwg.mxu0
        %v1756 = vsel %vm1080, %v1753, 0
        %1758 = vmatpush.msra.mxu0 0.0
        %1759 = vmatpush.msra.mxu0 0.0
        %1760 = vmatpush.msra.mxu0 0.0
        %1761 = vmatpush.msra.mxu0 0.0
        %1762 = vmatpush.msra.mxu0 0.0
        %1763 = vmatpush.msra.mxu0 0.0
        %1764 = vmatpush.msra.mxu0 0.0
        %1765 = vmatpush.msra.mxu0 0.0
        %1766 = vmatpush.msra.mxu0 0.0
        %1767 = vmatpush.msra.mxu0 0.0
        %1768 = vmatpush.msra.mxu0 0.0
        %1769 = vmatpush.msra.mxu0 0.0
        %1770 = vmatpush.msra.mxu0 0.0
        %1771 = vmatpush.msra.mxu0 0.0
        %1772 = vmatpush.msra.mxu0 0.0
        %1773 = vmatpush.msra.mxu0 %v683
        %1774 = vmatmul.f32.gmra.mxu0 %v1756
        %v1775 = vpop.f32.mrf.mxu0
        %v1776 = vadd.f32 0.0, %v1775
        %1777 = vdwg.mxu0
        %v1778 = vadd.f32 %v1678, %v1776
        %v1780 = vsel %vm1080, %v892, 0
        %v1783 = vsel %vm1080, %v984, 0
        %1785 = vmatpush.xpose.msra.mxu0 0.0
        %1786 = vmatpush.xpose.msra.mxu0 0.0
        %1787 = vmatpush.xpose.msra.mxu0 0.0
        %1788 = vmatpush.xpose.msra.mxu0 0.0
        %1789 = vmatpush.xpose.msra.mxu0 0.0
        %1790 = vmatpush.xpose.msra.mxu0 0.0
        %1791 = vmatpush.xpose.msra.mxu0 0.0
        %1792 = vmatpush.xpose.msra.mxu0 0.0
        %1793 = vmatpush.xpose.msra.mxu0 0.0
        %1794 = vmatpush.xpose.msra.mxu0 0.0
        %1795 = vmatpush.xpose.msra.mxu0 0.0
        %1796 = vmatpush.xpose.msra.mxu0 0.0
        %1797 = vmatpush.xpose.msra.mxu0 0.0
        %1798 = vmatpush.xpose.msra.mxu0 0.0
        %1799 = vmatpush.xpose.msra.mxu0 0.0
        %1800 = vmatpush.xpose.msra.mxu0 %v1783
        %1801 = vmatmul.f32.gmra.mxu0 %v1780
        %v1802 = vpop.f32.mrf.mxu0
        %v1803 = vadd.f32 0.0, %v1802
        %1804 = vdwg.mxu0
        %v1805 = vmul.f32 %v1803, 0.35355338
        %v1806 = vsel %vm1510, -1e+09, %v1805
        %v1807 = vsel %vm1080, %v1806, -inf
        %1808 = vmax.xlane.f32.xlu0 %v1807
        %v1809 = vpop.xlane.xlu0 %1808
        %v1810 = vsub.f32 %v1806, %v1809
        %v1811 = vmul.f32 %v1810, 1.442695
        %v1812 = vpow.pop %v1811
        %v1813 = vsel %vm1080, %v1812, 0.0
        %1814 = vadd.xlane.f32.xlu0 %v1813
        %v1815 = vpop.xlane.xlu0 %1814
        %v1816 = vrcp.pop %v1815
        %v1817 = vmul.f32 %v1815, %v1816
        %v1818 = vsub.f32 1.0, %v1817
        %v1819 = vmul.f32 %v1816, %v1818
        %v1820 = vadd.f32 %v1816, %v1819
        %vm1821 = vweird.f32 %v1815
        %vm1822 = vweird.f32 %v1816
        %vm1823 = vmor %vm1821, %vm1822
        %v1824 = vsel %vm1823, %v1816, %v1820
        %v1825 = vand.u32 2147483647, %v1815
        %vm1826 = vcmp.eq.f32.partialorder %v1825, 8.507059e+37
        %v1827 = vand.u32 %v1815, 2147483648
        %v1828 = vor.u32 1.1754944e-38, %v1827
        %v1829 = vsel %vm1826, %v1828, %v1824
        %v1830 = vmul.f32 %v1812, %v1829
        %v1832 = vsel %vm1080, %v1830, 0
        %1834 = vmatpush.msra.mxu0 0.0
        %1835 = vmatpush.msra.mxu0 0.0
        %1836 = vmatpush.msra.mxu0 0.0
        %1837 = vmatpush.msra.mxu0 0.0
        %1838 = vmatpush.msra.mxu0 0.0
        %1839 = vmatpush.msra.mxu0 0.0
        %1840 = vmatpush.msra.mxu0 0.0
        %1841 = vmatpush.msra.mxu0 0.0
        %1842 = vmatpush.msra.mxu0 0.0
        %1843 = vmatpush.msra.mxu0 0.0
        %1844 = vmatpush.msra.mxu0 0.0
        %1845 = vmatpush.msra.mxu0 0.0
        %1846 = vmatpush.msra.mxu0 0.0
        %1847 = vmatpush.msra.mxu0 0.0
        %1848 = vmatpush.msra.mxu0 0.0
        %1849 = vmatpush.msra.mxu0 %v1076
        %1850 = vmatmul.f32.gmra.mxu0 %v1832
        %v1851 = vpop.f32.mrf.mxu0
        %v1852 = vadd.f32 0.0, %v1851
        %1853 = vdwg.mxu0
        %v1855 = vsel %vm1080, %v1852, 0
        %1857 = vmatpush.msra.mxu0 0.0
        %1858 = vmatpush.msra.mxu0 0.0
        %1859 = vmatpush.msra.mxu0 0.0
        %1860 = vmatpush.msra.mxu0 0.0
        %1861 = vmatpush.msra.mxu0 0.0
        %1862 = vmatpush.msra.mxu0 0.0
        %1863 = vmatpush.msra.mxu0 0.0
        %1864 = vmatpush.msra.mxu0 0.0
        %1865 = vmatpush.msra.mxu0 0.0
        %1866 = vmatpush.msra.mxu0 0.0
        %1867 = vmatpush.msra.mxu0 0.0
        %1868 = vmatpush.msra.mxu0 0.0
        %1869 = vmatpush.msra.mxu0 0.0
        %1870 = vmatpush.msra.mxu0 0.0
        %1871 = vmatpush.msra.mxu0 0.0
        %1872 = vmatpush.msra.mxu0 %v684
        %1873 = vmatmul.f32.gmra.mxu0 %v1855
        %v1874 = vpop.f32.mrf.mxu0
        %v1875 = vadd.f32 0.0, %v1874
        %1876 = vdwg.mxu0
        %v1877 = vadd.f32 %v1778, %v1875
        %v1878 = vadd.f32 %v623, %v1477
        %v1879 = vadd.f32 %v624, %v1877
        %v1880 = vsel %vm699, %v1878, 0.0
        %1881 = vadd.xlane.f32.xlu0 %v1880
        %v1882 = vpop.xlane.xlu0 %1881
        %v1883 = vsel %vm699, %v1879, 0.0
        %1884 = vadd.xlane.f32.xlu0 %v1883
        %v1885 = vpop.xlane.xlu0 %1884
        %v1886 = vmul.f32 %v1882, %v712
        %v1887 = vmul.f32 %v1885, %v712
        %v1888 = vsub.f32 %v1878, %v1886
        %v1889 = vsub.f32 %v1879, %v1887
        %v1890 = vmul.f32 %v1888, %v1888
        %v1891 = vmul.f32 %v1889, %v1889
        %v1892 = vsel %vm699, %v1890, 0.0
        %1893 = vadd.xlane.f32.xlu0 %v1892
        %v1894 = vpop.xlane.xlu0 %1893
        %v1895 = vsel %vm699, %v1891, 0.0
        %1896 = vadd.xlane.f32.xlu0 %v1895
        %v1897 = vpop.xlane.xlu0 %1896
        %v1898 = vmul.f32 %v1894, %v731
        %v1899 = vmul.f32 %v1897, %v731
        %v1900 = vrsqrt.pop %v1898
        %v1901 = vmul.f32 %v1900, %v1898
        %v1902 = vmul.f32 %v1901, %v1900
        %v1903 = vmul.f32 0.5, %v1902
        %v1904 = vsub.f32 1.5, %v1903
        %v1905 = vmul.f32 %v1900, %v1904
        %v1906 = vmul.f32 %v1898, %v1905
        %vm1907 = vcmp.eq.f32.partialorder %v1898, inf
        %v1908 = vsel %vm1907, %v1898, %v1906
        %vm1909 = vcmp.eq.f32.partialorder %v1898, 0.0
        %v1910 = vand.u32 %v1898, 2147483648
        %v1911 = vsel %vm1909, %v1910, %v1908
        %v1912 = vrsqrt.pop %v1899
        %v1913 = vmul.f32 %v1912, %v1899
        %v1914 = vmul.f32 %v1913, %v1912
        %v1915 = vmul.f32 0.5, %v1914
        %v1916 = vsub.f32 1.5, %v1915
        %v1917 = vmul.f32 %v1912, %v1916
        %v1918 = vmul.f32 %v1899, %v1917
        %vm1919 = vcmp.eq.f32.partialorder %v1899, inf
        %v1920 = vsel %vm1919, %v1899, %v1918
        %vm1921 = vcmp.eq.f32.partialorder %v1899, 0.0
        %v1922 = vand.u32 %v1899, 2147483648
        %v1923 = vsel %vm1921, %v1922, %v1920
        %v1924 = vstv %s630
        %v1925 = vmul.f32 %v1924, %v1888
        %v1926 = vmul.f32 %v1924, %v1889
        %v1927 = vadd.f32 %v1911, 1e-06
        %v1928 = vadd.f32 %v1923, 1e-06
        %v1929 = vrcp.pop %v1927
        %v1930 = vmul.f32 %v1927, %v1929
        %v1931 = vsub.f32 1.0, %v1930
        %v1932 = vmul.f32 %v1929, %v1931
        %v1933 = vadd.f32 %v1929, %v1932
        %vm1934 = vweird.f32 %v1927
        %vm1935 = vweird.f32 %v1929
        %vm1936 = vmor %vm1934, %vm1935
        %v1937 = vsel %vm1936, %v1929, %v1933
        %v1938 = vand.u32 2147483647, %v1927
        %vm1939 = vcmp.eq.f32.partialorder %v1938, 8.507059e+37
        %v1940 = vand.u32 %v1927, 2147483648
        %v1941 = vor.u32 1.1754944e-38, %v1940
        %v1942 = vsel %vm1939, %v1941, %v1937
        %v1943 = vmul.f32 %v1925, %v1942
        %v1944 = vrcp.pop %v1928
        %v1945 = vmul.f32 %v1928, %v1944
        %v1946 = vsub.f32 1.0, %v1945
        %v1947 = vmul.f32 %v1944, %v1946
        %v1948 = vadd.f32 %v1944, %v1947
        %vm1949 = vweird.f32 %v1928
        %vm1950 = vweird.f32 %v1944
        %vm1951 = vmor %vm1949, %vm1950
        %v1952 = vsel %vm1951, %v1944, %v1948
        %v1953 = vand.u32 2147483647, %v1928
        %vm1954 = vcmp.eq.f32.partialorder %v1953, 8.507059e+37
        %v1955 = vand.u32 %v1928, 2147483648
        %v1956 = vor.u32 1.1754944e-38, %v1955
        %v1957 = vsel %vm1954, %v1956, %v1952
        %v1958 = vmul.f32 %v1926, %v1957
        %v1959 = vstv %s632
        %v1960 = vadd.f32 %v1943, %v1959
        %v1961 = vadd.f32 %v1958, %v1959
        %v1963 = vperm.slane %v689, 0
        %v1966 = vsel %vm699, %v1960, 0
        %v1969 = vsel %vm699, %v1961, 0
        %1971 = vmatpush.msra.mxu0 0.0
        %1972 = vmatpush.msra.mxu0 0.0
        %1973 = vmatpush.msra.mxu0 0.0
        %1974 = vmatpush.msra.mxu0 0.0
        %1975 = vmatpush.msra.mxu0 0.0
        %1976 = vmatpush.msra.mxu0 0.0
        %1977 = vmatpush.msra.mxu0 0.0
        %1978 = vmatpush.msra.mxu0 0.0
        %1979 = vmatpush.msra.mxu0 0.0
        %1980 = vmatpush.msra.mxu0 0.0
        %1981 = vmatpush.msra.mxu0 0.0
        %1982 = vmatpush.msra.mxu0 0.0
        %1983 = vmatpush.msra.mxu0 %v688
        %1984 = vmatpush.msra.mxu0 %v687
        %1985 = vmatpush.msra.mxu0 %v686
        %1986 = vmatpush.msra.mxu0 %v685
        %1987 = vmatmul.f32.gmra.mxu0 %v1966
        %v1988 = vpop.f32.mrf.mxu0
        %v1989 = vadd.f32 %v1963, %v1988
        %1990 = vmatmul.f32.gmra.mxu0 %v1969
        %v1991 = vpop.f32.mrf.mxu0
        %v1992 = vadd.f32 %v1963, %v1991
        %1993 = vdwg.mxu0
        %v1994 = vmax.f32 %v1989, 0.0
        %v1995 = vmax.f32 %v1992, 0.0
        %v1997 = vperm.slane %v698, 0
        %vm1999 = vcmask 523264
        %v2001 = vsel %vm1999, %v1994, 0
        %v2004 = vsel %vm1999, %v1995, 0
        %2006 = vmatpush.msra.mxu0 0.0
        %2007 = vmatpush.msra.mxu0 0.0
        %2008 = vmatpush.msra.mxu0 0.0
        %2009 = vmatpush.msra.mxu0 0.0
        %2010 = vmatpush.msra.mxu0 0.0
        %2011 = vmatpush.msra.mxu0 0.0
        %2012 = vmatpush.msra.mxu0 0.0
        %2013 = vmatpush.msra.mxu0 0.0
        %2014 = vmatpush.msra.mxu0 %v697
        %2015 = vmatpush.msra.mxu0 %v696
        %2016 = vmatpush.msra.mxu0 %v695
        %2017 = vmatpush.msra.mxu0 %v694
        %2018 = vmatpush.msra.mxu0 %v693
        %2019 = vmatpush.msra.mxu0 %v692
        %2020 = vmatpush.msra.mxu0 %v691
        %2021 = vmatpush.msra.mxu0 %v690
        %2022 = vmatmul.f32.gmra.mxu0 %v2001
        %v2023 = vpop.f32.mrf.mxu0
        %v2024 = vadd.f32 %v1997, %v2023
        %2025 = vmatmul.f32.gmra.mxu0 %v2004
        %v2026 = vpop.f32.mrf.mxu0
        %v2027 = vadd.f32 %v1997, %v2026
        %2028 = vdwg.mxu0
        %v2029 = vadd.f32 %v1878, %v2024
        %v2030 = vadd.f32 %v1879, %v2027
        %2031 = vst.msk [vmem:[#allocation2] sm:$0xff] %vm699, %v2029
        %2032 = vst.msk [vmem:[#allocation2 + $0x8] sm:$0xff] %vm699, %v2030
        %p2033 = scmp.eq.s32.totalorder %s31, 1
        // Predicated region
        $region81: #{tpu_custom_call.1} parent=67 // pred_check
          %p2034 = pneg %p2033
        $region82: #{tpu_custom_call.1} parent=67 // pred_check_branch
          %2036 = sbr.rel (%p2034) target = $region84
        $region83: #{tpu_custom_call.1} parent=67 // pred_region
          %s2037 = sld [smem:[#allocation6]]
          %s2038 = sld [smem:[#allocation6 + $0x1]]
          %v2039 = vsel %vm699, %v2029, 0.0
          %2040 = vadd.xlane.f32.xlu0 %v2039
          %v2041 = vpop.xlane.xlu0 %2040
          %v2042 = vsel %vm699, %v2030, 0.0
          %2043 = vadd.xlane.f32.xlu0 %v2042
          %v2044 = vpop.xlane.xlu0 %2043
          %v2045 = vmul.f32 %v2041, %v712
          %v2046 = vmul.f32 %v2044, %v712
          %v2047 = vsub.f32 %v2029, %v2045
          %v2048 = vsub.f32 %v2030, %v2046
          %v2049 = vmul.f32 %v2047, %v2047
          %v2050 = vmul.f32 %v2048, %v2048
          %v2051 = vsel %vm699, %v2049, 0.0
          %2052 = vadd.xlane.f32.xlu0 %v2051
          %v2053 = vpop.xlane.xlu0 %2052
          %v2054 = vsel %vm699, %v2050, 0.0
          %2055 = vadd.xlane.f32.xlu0 %v2054
          %v2056 = vpop.xlane.xlu0 %2055
          %v2057 = vmul.f32 %v2053, %v731
          %v2058 = vmul.f32 %v2056, %v731
          %v2059 = vrsqrt.pop %v2057
          %v2060 = vmul.f32 %v2059, %v2057
          %v2061 = vmul.f32 %v2060, %v2059
          %v2062 = vmul.f32 0.5, %v2061
          %v2063 = vsub.f32 1.5, %v2062
          %v2064 = vmul.f32 %v2059, %v2063
          %v2065 = vmul.f32 %v2057, %v2064
          %vm2066 = vcmp.eq.f32.partialorder %v2057, inf
          %v2067 = vsel %vm2066, %v2057, %v2065
          %vm2068 = vcmp.eq.f32.partialorder %v2057, 0.0
          %v2069 = vand.u32 %v2057, 2147483648
          %v2070 = vsel %vm2068, %v2069, %v2067
          %v2071 = vrsqrt.pop %v2058
          %v2072 = vmul.f32 %v2071, %v2058
          %v2073 = vmul.f32 %v2072, %v2071
          %v2074 = vmul.f32 0.5, %v2073
          %v2075 = vsub.f32 1.5, %v2074
          %v2076 = vmul.f32 %v2071, %v2075
          %v2077 = vmul.f32 %v2058, %v2076
          %vm2078 = vcmp.eq.f32.partialorder %v2058, inf
          %v2079 = vsel %vm2078, %v2058, %v2077
          %vm2080 = vcmp.eq.f32.partialorder %v2058, 0.0
          %v2081 = vand.u32 %v2058, 2147483648
          %v2082 = vsel %vm2080, %v2081, %v2079
          %v2083 = vstv %s2037
          %v2084 = vmul.f32 %v2083, %v2047
          %v2085 = vmul.f32 %v2083, %v2048
          %v2086 = vadd.f32 %v2070, 1e-06
          %v2087 = vadd.f32 %v2082, 1e-06
          %v2088 = vrcp.pop %v2086
          %v2089 = vmul.f32 %v2086, %v2088
          %v2090 = vsub.f32 1.0, %v2089
          %v2091 = vmul.f32 %v2088, %v2090
          %v2092 = vadd.f32 %v2088, %v2091
          %vm2093 = vweird.f32 %v2086
          %vm2094 = vweird.f32 %v2088
          %vm2095 = vmor %vm2093, %vm2094
          %v2096 = vsel %vm2095, %v2088, %v2092
          %v2097 = vand.u32 2147483647, %v2086
          %vm2098 = vcmp.eq.f32.partialorder %v2097, 8.507059e+37
          %v2099 = vand.u32 %v2086, 2147483648
          %v2100 = vor.u32 1.1754944e-38, %v2099
          %v2101 = vsel %vm2098, %v2100, %v2096
          %v2102 = vmul.f32 %v2084, %v2101
          %v2103 = vrcp.pop %v2087
          %v2104 = vmul.f32 %v2087, %v2103
          %v2105 = vsub.f32 1.0, %v2104
          %v2106 = vmul.f32 %v2103, %v2105
          %v2107 = vadd.f32 %v2103, %v2106
          %vm2108 = vweird.f32 %v2087
          %vm2109 = vweird.f32 %v2103
          %vm2110 = vmor %vm2108, %vm2109
          %v2111 = vsel %vm2110, %v2103, %v2107
          %v2112 = vand.u32 2147483647, %v2087
          %vm2113 = vcmp.eq.f32.partialorder %v2112, 8.507059e+37
          %v2114 = vand.u32 %v2087, 2147483648
          %v2115 = vor.u32 1.1754944e-38, %v2114
          %v2116 = vsel %vm2113, %v2115, %v2111
          %v2117 = vmul.f32 %v2085, %v2116
          %v2118 = vstv %s2038
          %v2119 = vadd.f32 %v2102, %v2118
          %v2120 = vadd.f32 %v2117, %v2118
          %2121 = vst.msk [vmem:[#allocation8] sm:$0xff] %vm699, %v2119
          %2122 = vst.msk [vmem:[#allocation8 + $0x8] sm:$0xff] %vm699, %v2120
        $region84: #{tpu_custom_call.1} parent=67 // pred_fallthru
          _
        // Predicated region
        $region85: #{tpu_custom_call.1} parent=67 // pred_check
          %p2123 = pneg %p358
        $region86: #{tpu_custom_call.1} parent=67 // pred_check_branch
          %2125 = sbr.rel (%p2123) target = $region88
        $region87: #{tpu_custom_call.1} parent=67 // pred_region
          %s2126 = smul.u32 2, %s30
          %2128 = vsyncadd [#allocation4], 0
          %s2129 = smul.addr %s2126, 8
          %s2130 = scalar_lea.hbm %s12, %s2129
          %s2131 = sshll.u32 [#allocation8], 4
          %s2132 = int_to_ptr.vmem [resolvable:$true] %s2131
          %s2133 = sshll.u32 %s2130, 4
          %s2134 = int_to_ptr.hbm [resolvable:$true] %s2133
          %2139 = dma.vmem_to_hbm [thread:$0]  %s2132, 256, %s2134, [#allocation4], 128, 128, 8
        $region88: #{tpu_custom_call.1} parent=67 // pred_fallthru
          _
        // Predicated region
        $region89: #{tpu_custom_call.1} parent=67 // pred_check
          %p2140 = pneg %p358
        $region90: #{tpu_custom_call.1} parent=67 // pred_check_branch
          %2142 = sbr.rel (%p2140) target = $region92
        $region91: #{tpu_custom_call.1} parent=67 // pred_region
          %2144 = dma.done [#allocation4], 256
        $region92: #{tpu_custom_call.1} parent=67 // pred_fallthru
          _
      $region68: #{tpu_custom_call.1} parent=5 // pred_fallthru
        _
      %p2145 = scmp.le.s32.totalorder 2, %s21
      // Predicated region
      $region93: #{tpu_custom_call.1} parent=5 // pred_check
        %p2146 = pneg %p2145
      $region94: #{tpu_custom_call.1} parent=5 // pred_check_branch
        %2148 = sbr.rel (%p2146) target = $region96
      $region95: #{tpu_custom_call.1} parent=5 // pred_region
        %s2149 = ssub.s32 %s21, 2
      $region96: #{tpu_custom_call.1} parent=5 // pred_fallthru
        _
    $region6: #{tpu_custom_call.1} parent=1 // loop_footer
      %s25 = sadd.s32 1, %s21
    $region7: #{tpu_custom_call.1} parent=1 // loop_footer_branch
      %20 = sbr.rel target = $region3
    $region8: #{tpu_custom_call.1} parent=1 // loop_exit
      _
    %2150 = vsyncpa [#allocation4], 1
    %s2151 = scalar_lea.sflag [#allocation4], 1
    %2152 = vsyncpa %s2151, 1
    %2153 = vsyncpa [#allocation5], 1
    %s2154 = scalar_lea.sflag [#allocation5], 1
    %2155 = vsyncpa %s2154, 1
    %2156 = vsyncpa [#allocation7], 1

</llo_original>
